<compile_context>
chip_gen: v6e
topology: v6e:2x2x1
jax: 0.10.0
libtpu: 0.0.40
codegen_flags: <defaults>
</compile_context>

<pallas_src>
import functools

import jax
import jax.numpy as jnp
from jax.experimental import pallas as pl
from jax.experimental.pallas import tpu as pltpu


# ----------------------------- Pallas kernel ------------------------------ #
def fused_embeddings_kernel(
    word_ref,   # [TN, H]        bf16  word embeddings (gathered)
    pin_ref,    # [L-1, TN, 2E]  bf16  shifted-concat pinyin taps (loc-major)
    glyf_ref,   # [TN, H]        bf16  glyph embeddings (glyph_map folded in)
    pos_ref,    # [P,  H]        bf16  position (+token-type-0) table, resident
    cw01_ref,   # [2E, H]        bf16  conv weight, both taps stacked
    fw_w_ref,   # [H,  H]        bf16  map_fc weight block: word part
    fw_p_ref,   # [H,  H]        bf16  map_fc weight block: pinyin part
    fw_g_ref,   # [H,  H]        bf16  map_fc weight block: glyph part
    fb_ref,     # [1,  H]        f32   map_fc bias (+ conv bias folded in)
    ln_g_ref,   # [1,  H]        f32   LayerNorm gamma
    ln_b_ref,   # [1,  H]        f32   LayerNorm beta
    out_ref,    # [TN, H]        bf16
    *,
    eps: float,
):
    lm1, tn, e2 = pin_ref.shape           # L-1, tile rows, 2E
    H = out_ref.shape[1]

    # ---- PinyinEmbedding: Conv1d(k=2) + max_pool, as ONE K=2E matmul ----
    # (tn, 2E) second-minor dim is sublane-tile aligned, so the leading-dim
    # merge/split reshapes are free views.
    pin2d = pin_ref[...].reshape(lm1 * tn, e2)                    # bf16
    conv = jnp.dot(pin2d, cw01_ref[...],
                   preferred_element_type=jnp.float32)            # [(L-1)*tn, H]
    pooled = jnp.max(conv.reshape(lm1, tn, H), axis=0)            # [tn, H] f32

    # ---- map_fc(concat([word, pinyin, glyph])) as three split matmuls ----
    # (glyph_map folded into glyf, conv bias folded into fb -- done offline.)
    fused = (
        jnp.dot(word_ref[...], fw_w_ref[...], preferred_element_type=jnp.float32)
        + jnp.dot(pooled.astype(jnp.bfloat16), fw_p_ref[...],
                  preferred_element_type=jnp.float32)
        + jnp.dot(glyf_ref[...], fw_g_ref[...], preferred_element_type=jnp.float32)
        + fb_ref[...]
    )

    # ---- + position (+ token-type-0, folded) from the resident table ----
    P = pos_ref.shape[0]
    if P == tn:
        pos = pos_ref[...].astype(jnp.float32)
    elif P > tn:                       # several position blocks per sequence
        nblk = P // tn
        off = pl.multiple_of((pl.program_id(0) % nblk) * tn, tn)
        pos = pos_ref[pl.ds(off, tn), :].astype(jnp.float32)
    else:                              # one row tile spans several sequences
        pos = jnp.tile(pos_ref[...].astype(jnp.float32), (tn // P, 1))
    x = fused + pos

    # ---- LayerNorm, single-pass stats, f32 ----
    mean = jnp.mean(x, axis=-1, keepdims=True)
    mean2 = jnp.mean(x * x, axis=-1, keepdims=True)
    var = mean2 - mean * mean
    y = (x - mean) * jax.lax.rsqrt(var + eps)
    y = y * ln_g_ref[...] + ln_b_ref[...]
    out_ref[...] = y.astype(out_ref.dtype)


# --------------------------- offline param prep ---------------------------- #
def prepare_params(params):
    """One-time re-layout + constant folding of the PyTorch-layout parameters.

    * glyph_map Linear folded into the glyph embedding table (f32, then bf16).
    * token-type-0 row folded into the position table (streamed bf16).
    * the two Conv1d(k=2) taps stacked into one [2E, H] weight.
    * conv bias folded through the pinyin block of map_fc into its bias.
    """
    H = params["word_emb"].shape[1]
    cw = params["conv_w"]                                      # [H, E, 2]
    gly_tab = (params["gly_emb"] @ params["glyph_map_w"].T
               + params["glyph_map_b"])                        # [vocab, H] f32
    fw_w = jnp.transpose(params["map_fc_w"][:, 0:H])           # [H, H] f32
    fw_p = jnp.transpose(params["map_fc_w"][:, H:2 * H])
    fw_g = jnp.transpose(params["map_fc_w"][:, 2 * H:3 * H])
    fb = params["map_fc_b"][None, :] + params["conv_b"][None, :] @ fw_p   # cb fold
    cw01 = jnp.concatenate(
        [jnp.transpose(cw[:, :, 0]), jnp.transpose(cw[:, :, 1])], axis=0)  # [2E, H]
    pos_tok = params["pos_emb"] + params["tok_emb"][0:1]       # token-type-0 fold
    return dict(
        word_tab=params["word_emb"].astype(jnp.bfloat16),      # [vocab, H]
        pin_tab=params["pin_emb"].astype(jnp.bfloat16),        # [pin_vocab, E]
        gly_tab=gly_tab.astype(jnp.bfloat16),                  # [vocab, H]
        pos_tok_tab=pos_tok.astype(jnp.bfloat16),              # [max_pos, H]
        cw01=cw01.astype(jnp.bfloat16),                        # [2E, H]
        fw_w=fw_w.astype(jnp.bfloat16),
        fw_p=fw_p.astype(jnp.bfloat16),
        fw_g=fw_g.astype(jnp.bfloat16),
        fb=fb.astype(jnp.float32),                             # [1, H]
        ln_g=params["ln_g"][None, :].astype(jnp.float32),
        ln_b=params["ln_b"][None, :].astype(jnp.float32),
    )


def _pick_tn(N, seq):
    """Largest aligned row tile; prefer an even grid (v7x 2-TC balance)."""
    cands = (256, 128, 64, 32, 16, 8)
    ok = [c for c in cands
          if c <= N and N % c == 0 and (seq % c == 0 or c % seq == 0)]
    for c in ok:
        if (N // c) % 2 == 0:
            return c
    return ok[0] if ok else N


def _vmem_bytes_estimate(tn, H, E, L, P):
    """Rough VMEM budget: streamed tiles (2-deep) + resident constants + temps."""
    bf2, f4 = 2, 4
    stream = 2 * (2 * tn * H * bf2 + (L - 1) * tn * 2 * E * bf2) \
        + 2 * tn * H * bf2                                      # bf16 output
    const = 2 * (P * H * bf2 + 2 * E * H * bf2 + 3 * H * H * bf2 + 3 * H * f4)
    scratch = (L - 1) * tn * H * f4 + 3 * tn * H * f4           # f32 temporaries
    return stream + const + scratch + (2 << 20)                 # + slack


# ------------------------------ wrapper ----------------------------------- #
def fusion_bert_embeddings(prep, input_ids, pinyin_ids, *, token_type_ids=None,
                           eps=1e-12, tn=None):
    if token_type_ids is not None:
        # TODO(synk): nonzero token types would need a per-token gather path;
        # the module default (all-zero) is folded into the position table.
        raise NotImplementedError("only the default all-zero token_type_ids "
                                  "path is fused")
    bs, seq = input_ids.shape
    _, _, locs = pinyin_ids.shape
    assert locs >= 2, "Conv1d(k=2) needs at least 2 pinyin locations"
    H = prep["word_tab"].shape[1]
    E = prep["pin_tab"].shape[1]
    N = bs * seq
    assert seq <= prep["pos_tok_tab"].shape[0]

    if tn is None:
        tn = _pick_tn(N, seq)
    tn = min(tn, N)
    assert N % tn == 0, (N, tn)
    assert seq % tn == 0 or tn % seq == 0, (seq, tn)

    # --- glue: embedding-table gathers + pinyin tap concat (plain JAX) ---
    flat_ids = input_ids.reshape(-1)
    word = jnp.take(prep["word_tab"], flat_ids, axis=0)                # [N, H]
    glyf = jnp.take(prep["gly_tab"], flat_ids, axis=0)                 # [N, H]
    pin = jnp.take(prep["pin_tab"], pinyin_ids.reshape(N, locs), axis=0)  # [N,L,E]
    # shifted-concat conv input, loc-major so the in-kernel reshape is free:
    pin_cat = jnp.concatenate([pin[:, :-1, :], pin[:, 1:, :]], axis=-1)   # [N,L-1,2E]
    pin_cat = jnp.transpose(pin_cat, (1, 0, 2))                           # [L-1,N,2E]

    # position(+token-type) table: single resident block, sliced in-kernel.
    pos_tab = prep["pos_tok_tab"][:seq]                                # [seq,H] bf16
    P = seq

    grid = (N // tn,)
    row_spec = pl.BlockSpec((tn, H), lambda i: (i, 0))

    def const2d(a):
        return pl.BlockSpec(a.shape, lambda i: (0, 0))

    est = _vmem_bytes_estimate(tn, H, E, locs, P)
    # Cap at 48 MiB: v7x has only 64 MiB VMEM per TensorCore.
    vmem_limit = min(max(est, 32 * 1024 * 1024), 48 * 1024 * 1024)

    kernel = functools.partial(fused_embeddings_kernel, eps=eps)
    out = pl.pallas_call(
        kernel,
        out_shape=jax.ShapeDtypeStruct((N, H), jnp.bfloat16),     # bf16 writeback
        grid_spec=pltpu.PrefetchScalarGridSpec(
            num_scalar_prefetch=0,
            grid=grid,
            in_specs=[
                row_spec,                                              # word
                pl.BlockSpec((locs - 1, tn, 2 * E), lambda i: (0, i, 0)),  # pinyin
                row_spec,                                              # glyph
                pl.BlockSpec((P, H), lambda i: (0, 0)),                # pos (resident)
                const2d(prep["cw01"]),
                const2d(prep["fw_w"]), const2d(prep["fw_p"]),
                const2d(prep["fw_g"]), const2d(prep["fb"]),
                const2d(prep["ln_g"]), const2d(prep["ln_b"]),
            ],
            out_specs=row_spec,
        ),
        compiler_params=pltpu.CompilerParams(
            dimension_semantics=("parallel",),
            vmem_limit_bytes=vmem_limit,
        ),
    )(
        word, pin_cat, glyf, pos_tab,
        prep["cw01"], prep["fw_w"], prep["fw_p"], prep["fw_g"], prep["fb"],
        prep["ln_g"], prep["ln_b"],
    )
    return out.reshape(bs, seq, H)


# --------------------------- pure-JAX reference ---------------------------- #
def reference(params, input_ids, pinyin_ids, *, eps=1e-12):
    bs, seq = input_ids.shape
    _, _, locs = pinyin_ids.shape
    word = params["word_emb"][input_ids]                               # [bs,seq,H]
    emb = params["pin_emb"][pinyin_ids]                                # [bs,seq,L,E]
    x = emb.reshape(-1, locs, emb.shape[-1]).transpose(0, 2, 1)        # [N,E,L]
    w = params["conv_w"]                                               # [H,E,2]
    conv = (
        jnp.einsum("nel,oe->nol", x[:, :, :-1], w[:, :, 0])
        + jnp.einsum("nel,oe->nol", x[:, :, 1:], w[:, :, 1])
        + params["conv_b"][None, :, None]
    )
    pin = jnp.max(conv, axis=-1).reshape(bs, seq, -1)
    gly = params["gly_emb"][input_ids] @ params["glyph_map_w"].T + params["glyph_map_b"]
    cat = jnp.concatenate([word, pin, gly], axis=2)
    fused = cat @ params["map_fc_w"].T + params["map_fc_b"]
    pos = params["pos_emb"][jnp.arange(seq)][None]
    tok = params["tok_emb"][jnp.zeros((bs, seq), jnp.int32)]
    e = fused + pos + tok
    mu = e.mean(-1, keepdims=True)
    var = ((e - mu) ** 2).mean(-1, keepdims=True)
    return (e - mu) * jax.lax.rsqrt(var + eps) * params["ln_g"] + params["ln_b"]


# --------------------------------- main ------------------------------------ #
if __name__ == "__main__":
    # Small but lane-aligned shapes (H = 128; real ChineseBERT uses H = 768,
    # vocab = 23236, seq up to 512).
    bs, seq, H = 2, 128, 128
    vocab, max_pos, type_vocab = 100, 512, 2
    pin_vocab, pin_locs, E = 32, 8, 128
    G = 1728  # 3 fonts * 24 * 24

    key = jax.random.PRNGKey(0)
    ks = jax.random.split(key, 16)

    def rnd(k, shape, scale=0.02):
        return (scale * jax.random.normal(k, shape)).astype(jnp.float32)

    word_emb = rnd(ks[0], (vocab, H)).at[0].set(0.0)  # padding_idx=0
    params = dict(
        word_emb=word_emb,
        pos_emb=rnd(ks[1], (max_pos, H)),
        tok_emb=rnd(ks[2], (type_vocab, H)),
        pin_emb=rnd(ks[3], (pin_vocab, E)),
        conv_w=rnd(ks[4], (H, E, 2)),
        conv_b=rnd(ks[5], (H,)),
        gly_emb=rnd(ks[6], (vocab, G)),
        glyph_map_w=rnd(ks[7], (H, G)),
        glyph_map_b=rnd(ks[8], (H,)),
        map_fc_w=rnd(ks[9], (H, 3 * H)),
        map_fc_b=rnd(ks[10], (H,)),
        ln_g=jnp.ones((H,), jnp.float32),
        ln_b=jnp.zeros((H,), jnp.float32),
    )

    input_ids = jax.random.randint(ks[11], (bs, seq), 1, vocab, dtype=jnp.int32)
    pinyin_ids = jax.random.randint(
        ks[12], (bs, seq, pin_locs), 0, pin_vocab, dtype=jnp.int32
    )

    prep = prepare_params(params)                    # offline fold / re-layout
    out = fusion_bert_embeddings(prep, input_ids, pinyin_ids)
    out = jax.block_until_ready(out)

    ref = reference(params, input_ids, pinyin_ids)
    assert out.shape == (bs, seq, H)
    err = float(jnp.max(jnp.abs(out.astype(jnp.float32) - ref)))
    # bf16 tables/weights/output (f32 accumulation + f32 LayerNorm) vs the
    # pure-f32 reference.
    assert err < 6e-2, err
    # TODO(synk): dropout is inference-mode identity and therefore omitted.
    print("KERNEL_OK")
</pallas_src>

<mosaic_0001>
module attributes {stable_mosaic.version = 11 : i64} {
  func.func @fused_embeddings_kernel(%arg0: i32, %arg1: memref<128x128xbf16, #tpu.memory_space<vmem>>, %arg2: memref<7x128x256xbf16, #tpu.memory_space<vmem>>, %arg3: memref<128x128xbf16, #tpu.memory_space<vmem>>, %arg4: memref<128x128xbf16, #tpu.memory_space<vmem>>, %arg5: memref<256x128xbf16, #tpu.memory_space<vmem>>, %arg6: memref<128x128xbf16, #tpu.memory_space<vmem>>, %arg7: memref<128x128xbf16, #tpu.memory_space<vmem>>, %arg8: memref<128x128xbf16, #tpu.memory_space<vmem>>, %arg9: memref<1x128xf32, #tpu.memory_space<vmem>>, %arg10: memref<1x128xf32, #tpu.memory_space<vmem>>, %arg11: memref<1x128xf32, #tpu.memory_space<vmem>>, %arg12: memref<128x128xbf16, #tpu.memory_space<vmem>>) attributes {dimension_semantics = [#tpu.dimension_semantics<parallel>], iteration_bounds = array<i64: 2>, scalar_prefetch = 0 : i64, scratch_operands = 0 : i64, tpu.core_type = #tpu.core_type<tc>, window_params = [{transform_indices = @transform_0, window_bounds = array<i64: 128, 128>}, {transform_indices = @transform_1, window_bounds = array<i64: 7, 128, 256>}, {transform_indices = @transform_2, window_bounds = array<i64: 128, 128>}, {pipeline_mode = #tpu.pipeline_mode<synchronous>, transform_indices = @transform_3, window_bounds = array<i64: 128, 128>}, {pipeline_mode = #tpu.pipeline_mode<synchronous>, transform_indices = @transform_4, window_bounds = array<i64: 256, 128>}, {pipeline_mode = #tpu.pipeline_mode<synchronous>, transform_indices = @transform_5, window_bounds = array<i64: 128, 128>}, {pipeline_mode = #tpu.pipeline_mode<synchronous>, transform_indices = @transform_6, window_bounds = array<i64: 128, 128>}, {pipeline_mode = #tpu.pipeline_mode<synchronous>, transform_indices = @transform_7, window_bounds = array<i64: 128, 128>}, {pipeline_mode = #tpu.pipeline_mode<synchronous>, transform_indices = @transform_8, window_bounds = array<i64: 1, 128>}, {pipeline_mode = #tpu.pipeline_mode<synchronous>, transform_indices = @transform_9, window_bounds = array<i64: 1, 128>}, {pipeline_mode = #tpu.pipeline_mode<synchronous>, transform_indices = @transform_10, window_bounds = array<i64: 1, 128>}, {transform_indices = @transform_11, window_bounds = array<i64: 128, 128>}]} {
    %c0 = arith.constant 0 : index
    %c0_0 = arith.constant 0 : index
    %c0_1 = arith.constant 0 : index
    %0 = vector.load %arg2[%c0, %c0_0, %c0_1] : memref<7x128x256xbf16, #tpu.memory_space<vmem>>, vector<7x128x256xbf16>
    %1 = vector.shape_cast %0 : vector<7x128x256xbf16> to vector<896x256xbf16>
    %c0_2 = arith.constant 0 : index
    %c0_3 = arith.constant 0 : index
    %2 = vector.load %arg5[%c0_2, %c0_3] : memref<256x128xbf16, #tpu.memory_space<vmem>>, vector<256x128xbf16>
    %cst = arith.constant dense<0.000000e+00> : vector<896x128xf32>
    %3 = tpu.matmul %1, %2, %cst {dimension_numbers = #tpu.dot_dimension_numbers<[1], [0], [0], [1], [0, 0, 1, 1], [], []>} : vector<896x256xbf16>, vector<256x128xbf16>, vector<896x128xf32> -> vector<896x128xf32>
    %4 = vector.shape_cast %3 : vector<896x128xf32> to vector<7x128x128xf32>
    %cst_4 = arith.constant dense<0xFF800000> : vector<128x128xf32>
    %5 = vector.multi_reduction <maximumf>, %4, %cst_4 [0] : vector<7x128x128xf32> to vector<128x128xf32>
    %c0_5 = arith.constant 0 : index
    %c0_6 = arith.constant 0 : index
    %6 = vector.load %arg1[%c0_5, %c0_6] : memref<128x128xbf16, #tpu.memory_space<vmem>>, vector<128x128xbf16>
    %c0_7 = arith.constant 0 : index
    %c0_8 = arith.constant 0 : index
    %7 = vector.load %arg6[%c0_7, %c0_8] : memref<128x128xbf16, #tpu.memory_space<vmem>>, vector<128x128xbf16>
    %cst_9 = arith.constant dense<0.000000e+00> : vector<128x128xf32>
    %8 = tpu.matmul %6, %7, %cst_9 {dimension_numbers = #tpu.dot_dimension_numbers<[1], [0], [0], [1], [0, 0, 1, 1], [], []>} : vector<128x128xbf16>, vector<128x128xbf16>, vector<128x128xf32> -> vector<128x128xf32>
    %9 = arith.truncf %5 : vector<128x128xf32> to vector<128x128xbf16>
    %c0_10 = arith.constant 0 : index
    %c0_11 = arith.constant 0 : index
    %10 = vector.load %arg7[%c0_10, %c0_11] : memref<128x128xbf16, #tpu.memory_space<vmem>>, vector<128x128xbf16>
    %cst_12 = arith.constant dense<0.000000e+00> : vector<128x128xf32>
    %11 = tpu.matmul %9, %10, %cst_12 {dimension_numbers = #tpu.dot_dimension_numbers<[1], [0], [0], [1], [0, 0, 1, 1], [], []>} : vector<128x128xbf16>, vector<128x128xbf16>, vector<128x128xf32> -> vector<128x128xf32>
    %12 = arith.addf %8, %11 : vector<128x128xf32>
    %c0_13 = arith.constant 0 : index
    %c0_14 = arith.constant 0 : index
    %13 = vector.load %arg3[%c0_13, %c0_14] : memref<128x128xbf16, #tpu.memory_space<vmem>>, vector<128x128xbf16>
    %c0_15 = arith.constant 0 : index
    %c0_16 = arith.constant 0 : index
    %14 = vector.load %arg8[%c0_15, %c0_16] : memref<128x128xbf16, #tpu.memory_space<vmem>>, vector<128x128xbf16>
    %cst_17 = arith.constant dense<0.000000e+00> : vector<128x128xf32>
    %15 = tpu.matmul %13, %14, %cst_17 {dimension_numbers = #tpu.dot_dimension_numbers<[1], [0], [0], [1], [0, 0, 1, 1], [], []>} : vector<128x128xbf16>, vector<128x128xbf16>, vector<128x128xf32> -> vector<128x128xf32>
    %16 = arith.addf %12, %15 : vector<128x128xf32>
    %c0_18 = arith.constant 0 : index
    %c0_19 = arith.constant 0 : index
    %17 = vector.load %arg9[%c0_18, %c0_19] : memref<1x128xf32, #tpu.memory_space<vmem>>, vector<1x128xf32>
    %18 = vector.broadcast %17 : vector<1x128xf32> to vector<128x128xf32>
    %19 = arith.addf %16, %18 : vector<128x128xf32>
    %c0_20 = arith.constant 0 : index
    %c0_21 = arith.constant 0 : index
    %20 = vector.load %arg4[%c0_20, %c0_21] : memref<128x128xbf16, #tpu.memory_space<vmem>>, vector<128x128xbf16>
    %21 = arith.extf %20 : vector<128x128xbf16> to vector<128x128xf32>
    %22 = arith.addf %19, %21 : vector<128x128xf32>
    %cst_22 = arith.constant dense<0.000000e+00> : vector<128xf32>
    %23 = vector.multi_reduction <add>, %22, %cst_22 [1] : vector<128x128xf32> to vector<128xf32>
    %24 = vector.shape_cast %23 : vector<128xf32> to vector<128x1xf32>
    %cst_23 = arith.constant 1.280000e+02 : f32
    %25 = vector.broadcast %cst_23 : f32 to vector<128x1xf32>
    %26 = arith.divf %24, %25 : vector<128x1xf32>
    %27 = arith.mulf %22, %22 : vector<128x128xf32>
    %cst_24 = arith.constant dense<0.000000e+00> : vector<128xf32>
    %28 = vector.multi_reduction <add>, %27, %cst_24 [1] : vector<128x128xf32> to vector<128xf32>
    %29 = vector.shape_cast %28 : vector<128xf32> to vector<128x1xf32>
    %cst_25 = arith.constant 1.280000e+02 : f32
    %30 = vector.broadcast %cst_25 : f32 to vector<128x1xf32>
    %31 = arith.divf %29, %30 : vector<128x1xf32>
    %32 = arith.mulf %26, %26 : vector<128x1xf32>
    %33 = arith.subf %31, %32 : vector<128x1xf32>
    %34 = vector.broadcast %26 : vector<128x1xf32> to vector<128x128xf32>
    %35 = arith.subf %22, %34 : vector<128x128xf32>
    %cst_26 = arith.constant 9.99999996E-13 : f32
    %36 = vector.broadcast %cst_26 : f32 to vector<128x1xf32>
    %37 = arith.addf %33, %36 : vector<128x1xf32>
    %38 = math.rsqrt %37 : vector<128x1xf32>
    %39 = vector.broadcast %38 : vector<128x1xf32> to vector<128x128xf32>
    %40 = arith.mulf %35, %39 : vector<128x128xf32>
    %c0_27 = arith.constant 0 : index
    %c0_28 = arith.constant 0 : index
    %41 = vector.load %arg10[%c0_27, %c0_28] : memref<1x128xf32, #tpu.memory_space<vmem>>, vector<1x128xf32>
    %42 = vector.broadcast %41 : vector<1x128xf32> to vector<128x128xf32>
    %43 = arith.mulf %40, %42 : vector<128x128xf32>
    %c0_29 = arith.constant 0 : index
    %c0_30 = arith.constant 0 : index
    %44 = vector.load %arg11[%c0_29, %c0_30] : memref<1x128xf32, #tpu.memory_space<vmem>>, vector<1x128xf32>
    %45 = vector.broadcast %44 : vector<1x128xf32> to vector<128x128xf32>
    %46 = arith.addf %43, %45 : vector<128x128xf32>
    %47 = arith.truncf %46 : vector<128x128xf32> to vector<128x128xbf16>
    %c0_31 = arith.constant 0 : index
    %c0_32 = arith.constant 0 : index
    %48 = vector.load %arg12[%c0_31, %c0_32] : memref<128x128xbf16, #tpu.memory_space<vmem>>, vector<128x128xbf16>
    tpu.vector_store %arg12[%c0_31, %c0_32], %47 {strides = array<i32>} : memref<128x128xbf16, #tpu.memory_space<vmem>>, vector<128x128xbf16>,
    return
  }
  func.func @transform_0(%arg0: i32) -> (i32, i32) {
    %c0_i32 = arith.constant 0 : i32
    %c0_i32_0 = arith.constant 0 : i32
    return %arg0, %c0_i32 : i32, i32
  }
  func.func @transform_1(%arg0: i32) -> (i32, i32, i32) {
    %c0_i32 = arith.constant 0 : i32
    %c0_i32_0 = arith.constant 0 : i32
    %c0_i32_1 = arith.constant 0 : i32
    return %c0_i32, %arg0, %c0_i32_0 : i32, i32, i32
  }
  func.func @transform_2(%arg0: i32) -> (i32, i32) {
    %c0_i32 = arith.constant 0 : i32
    %c0_i32_0 = arith.constant 0 : i32
    return %arg0, %c0_i32 : i32, i32
  }
  func.func @transform_3(%arg0: i32) -> (i32, i32) {
    %c0_i32 = arith.constant 0 : i32
    %c0_i32_0 = arith.constant 0 : i32
    %c0_i32_1 = arith.constant 0 : i32
    return %c0_i32, %c0_i32_0 : i32, i32
  }
  func.func @transform_4(%arg0: i32) -> (i32, i32) {
    %c0_i32 = arith.constant 0 : i32
    %c0_i32_0 = arith.constant 0 : i32
    %c0_i32_1 = arith.constant 0 : i32
    return %c0_i32, %c0_i32_0 : i32, i32
  }
  func.func @transform_5(%arg0: i32) -> (i32, i32) {
    %c0_i32 = arith.constant 0 : i32
    %c0_i32_0 = arith.constant 0 : i32
    %c0_i32_1 = arith.constant 0 : i32
    return %c0_i32, %c0_i32_0 : i32, i32
  }
  func.func @transform_6(%arg0: i32) -> (i32, i32) {
    %c0_i32 = arith.constant 0 : i32
    %c0_i32_0 = arith.constant 0 : i32
    %c0_i32_1 = arith.constant 0 : i32
    return %c0_i32, %c0_i32_0 : i32, i32
  }
  func.func @transform_7(%arg0: i32) -> (i32, i32) {
    %c0_i32 = arith.constant 0 : i32
    %c0_i32_0 = arith.constant 0 : i32
    %c0_i32_1 = arith.constant 0 : i32
    return %c0_i32, %c0_i32_0 : i32, i32
  }
  func.func @transform_8(%arg0: i32) -> (i32, i32) {
    %c0_i32 = arith.constant 0 : i32
    %c0_i32_0 = arith.constant 0 : i32
    %c0_i32_1 = arith.constant 0 : i32
    return %c0_i32, %c0_i32_0 : i32, i32
  }
  func.func @transform_9(%arg0: i32) -> (i32, i32) {
    %c0_i32 = arith.constant 0 : i32
    %c0_i32_0 = arith.constant 0 : i32
    %c0_i32_1 = arith.constant 0 : i32
    return %c0_i32, %c0_i32_0 : i32, i32
  }
  func.func @transform_10(%arg0: i32) -> (i32, i32) {
    %c0_i32 = arith.constant 0 : i32
    %c0_i32_0 = arith.constant 0 : i32
    %c0_i32_1 = arith.constant 0 : i32
    return %c0_i32, %c0_i32_0 : i32, i32
  }
  func.func @transform_11(%arg0: i32) -> (i32, i32) {
    %c0_i32 = arith.constant 0 : i32
    %c0_i32_0 = arith.constant 0 : i32
    return %arg0, %c0_i32 : i32, i32
  }
}

</mosaic_0001>

<llo_original>
// kernel: tpu_custom_call.1
$region0: #{tpu_custom_call.1}
  #allocation0 [shape = 'u32[]', space=smem, size = 0x4, offset = 0x4, fixed_abs, tag = 'smem constant byte address 0x4 - core index']
  #allocation1 [shape = 'u32[144,128]{1,0:T(1,128)}', space=vmem, size = 0x12000, scoped, tag = 'internal scratch']
  #allocation17 [shape = 's32[]', space=sflag, size = 0x4, offset = 0, fixed_abs, tag = 'sflag constant byte address 0x0 - dummy sync flag']
  %s0 = inlined_call_operand.hbm [shape: bf16[256,128], index: 0, kind: input, shape index: {}]
  %s1 = inlined_call_operand.hbm [shape: bf16[7,256,256], index: 1, kind: input, shape index: {}]
  %s2 = inlined_call_operand.hbm [shape: bf16[256,128], index: 2, kind: input, shape index: {}]
  %s3 = inlined_call_operand.hbm [shape: bf16[128,128], index: 3, kind: input, shape index: {}]
  %s4 = inlined_call_operand.hbm [shape: bf16[256,128], index: 4, kind: input, shape index: {}]
  %s5 = inlined_call_operand.hbm [shape: bf16[128,128], index: 5, kind: input, shape index: {}]
  %s6 = inlined_call_operand.hbm [shape: bf16[128,128], index: 6, kind: input, shape index: {}]
  %s7 = inlined_call_operand.hbm [shape: bf16[128,128], index: 7, kind: input, shape index: {}]
  %s8 = inlined_call_operand.vmem [shape: f32[1,128], index: 8, kind: input, shape index: {}]
  %s9 = inlined_call_operand.vmem [shape: f32[1,128], index: 9, kind: input, shape index: {}]
  %s10 = inlined_call_operand.vmem [shape: f32[1,128], index: 10, kind: input, shape index: {}]
  %s11 = inlined_call_operand.hbm [shape: bf16[256,128], index: 11, kind: output, shape index: {}]
  %s12 = sld [smem:[#allocation0]]
  $region109: #{tpu_custom_call.1} parent=0
    _
  %s14 = ssub.s32 1, %s12
  %s15 = scalar_select 0, %s14, %s12
  $region1: #{tpu_custom_call.1} parent=0
    #allocation2 [shape = 'u8[65536]{0}', space=vmem, size = 0x10000, scoped, tag = 'input window, operand 0']
    #allocation3 [shape = 's32[2]{0}', space=sflag, size = 0x8, scoped, tag = 'scoped memory for tpu_custom_call.1']
    #allocation4 [shape = 's32[2]{0}', space=sflag, size = 0x8, scoped, tag = 'scoped memory for tpu_custom_call.1']
    #allocation5 [shape = 'u8[917504]{0}', space=vmem, size = 0xe0000, scoped, tag = 'input window, operand 1']
    #allocation6 [shape = 's32[2]{0}', space=sflag, size = 0x8, scoped, tag = 'scoped memory for tpu_custom_call.1']
    #allocation7 [shape = 'u8[65536]{0}', space=vmem, size = 0x10000, scoped, tag = 'input window, operand 2']
    #allocation8 [shape = 'u8[32768]{0}', space=vmem, size = 0x8000, scoped, tag = 'input window, operand 3, single buffered']
    #allocation9 [shape = 's32[1]{0}', space=sflag, size = 0x4, scoped, tag = 'scoped memory for tpu_custom_call.1']
    #allocation10 [shape = 'u8[65536]{0}', space=vmem, size = 0x10000, scoped, tag = 'input window, operand 4, single buffered']
    #allocation11 [shape = 'u8[32768]{0}', space=vmem, size = 0x8000, scoped, tag = 'input window, operand 5, single buffered']
    #allocation12 [shape = 's32[1]{0}', space=sflag, size = 0x4, scoped, tag = 'scoped memory for tpu_custom_call.1']
    #allocation13 [shape = 'u8[32768]{0}', space=vmem, size = 0x8000, scoped, tag = 'input window, operand 6, single buffered']
    #allocation14 [shape = 'u8[32768]{0}', space=vmem, size = 0x8000, scoped, tag = 'input window, operand 7, single buffered']
    #allocation15 [shape = 's32[1]{0}', space=sflag, size = 0x4, scoped, tag = 'scoped memory for tpu_custom_call.1']
    #allocation16 [shape = 'u8[65536]{0}', space=vmem, size = 0x10000, scoped, tag = 'output window, operand 0']
    %16 = vsyncpa [#allocation3], 0
    %s17 = scalar_lea.sflag [#allocation3], 1
    %18 = vsyncpa %s17, 0
    %19 = vsyncpa [#allocation6], 0
    %s20 = scalar_lea.sflag [#allocation6], 1
    %21 = vsyncpa %s20, 0
    %22 = vsyncpa [#allocation9], 0
    %23 = vsyncpa [#allocation12], 0
    %24 = vsyncpa [#allocation15], 0
    %25 = vsyncpa [#allocation4], 0
    %s26 = scalar_lea.sflag [#allocation4], 1
    %27 = vsyncpa %s26, 0
    loop: start=0, step=1, limit=4
    $region2: #{tpu_custom_call.1} parent=1 // loop_pre_header
      _
    $region3: #{tpu_custom_call.1} parent=1 // loop_header
      %s29 = sphi 0, %s33
      %p30 = scmp.ge.s32.totalorder %s29, 4
      %s39 = sphi 0, %s41
      %s42 = sphi 0, %s39
      %s43 = sphi 0, %s42
      %s59 = sphi 0, %s43
      %s65 = sphi 0, %s67
      %s68 = sphi 0, %s65
      %s69 = sphi 0, %s68
      %s85 = sphi 0, %s69
      %s91 = sphi 0, %s93
      %s94 = sphi 0, %s91
      %s95 = sphi 0, %s94
      %s111 = sphi 0, %s95
      %s115 = sphi 0, %s115
      %s117 = sphi 0, %s115
      %s118 = sphi 0, %s117
      %s132 = sphi 0, %s118
      %s136 = sphi 0, %s136
      %s138 = sphi 0, %s136
      %s139 = sphi 0, %s138
      %s153 = sphi 0, %s139
      %s157 = sphi 0, %s157
      %s159 = sphi 0, %s157
      %s160 = sphi 0, %s159
      %s174 = sphi 0, %s160
      %s178 = sphi 0, %s178
      %s180 = sphi 0, %s178
      %s181 = sphi 0, %s180
      %s195 = sphi 0, %s181
      %s199 = sphi 0, %s199
      %s201 = sphi 0, %s199
      %s202 = sphi 0, %s201
      %s216 = sphi 0, %s202
      %s220 = sphi 0, %s220
      %s222 = sphi 0, %s220
      %s223 = sphi 0, %s222
      %s237 = sphi 0, %s223
      %s241 = sphi 0, %s241
      %s243 = sphi 0, %s241
      %s244 = sphi 0, %s243
      %s258 = sphi 0, %s244
      %s262 = sphi 0, %s262
      %s264 = sphi 0, %s262
      %s265 = sphi 0, %s264
      %s279 = sphi 0, %s265
      %s285 = sphi 0, %s287
      %s288 = sphi 0, %s285
      %s289 = sphi 0, %s288
      %s305 = sphi 0, %s289
    $region4: #{tpu_custom_call.1} parent=1 // loop_header_branch
      %32 = sbr.rel (%p30) target = $region8
    $region5: #{tpu_custom_call.1} parent=1 // loop_body
      %s34 = ssub.s32 %s29, 1
      %s35 = ssub.s32 %s29, 2
      %s36 = sadd.s32 %s29, 1
      %s37 = ssub.s32 %s29, %s36
      %p38 = scmp.eq.s32.totalorder %s37, 0
      %s40 = sadd.s32 %s39, 1
      %s41 = scalar_select %p38, %s39, %s40
      %p44 = pneg %p38
      %p45 = scmp.eq.s32.totalorder %s29, 1
      %p46 = por %p44, %p45
      %p47 = scmp.ne.s32.totalorder %s39, %s42
      %p48 = scmp.eq.s32.totalorder %s29, 0
      %p49 = por %p47, %p48
      %p50 = scmp.ne.s32.totalorder %s39, %s42
      %p51 = scmp.eq.s32.totalorder %s34, 1
      %p52 = por %p50, %p51
      %p53 = scmp.ne.s32.totalorder %s42, %s43
      %p54 = scmp.eq.s32.totalorder %s34, 0
      %p55 = por %p53, %p54
      %p56 = scmp.ne.s32.totalorder %s42, %s43
      %p57 = scmp.eq.s32.totalorder %s35, 1
      %p58 = por %p56, %p57
      %p60 = scmp.ne.s32.totalorder %s43, %s59
      %p61 = scmp.eq.s32.totalorder %s35, 0
      %p62 = por %p60, %p61
      %s63 = ssub.s32 %s29, %s36
      %p64 = scmp.eq.s32.totalorder %s63, 0
      %s66 = sadd.s32 %s65, 1
      %s67 = scalar_select %p64, %s65, %s66
      %p70 = pneg %p64
      %p71 = scmp.eq.s32.totalorder %s29, 1
      %p72 = por %p70, %p71
      %p73 = scmp.ne.s32.totalorder %s65, %s68
      %p74 = scmp.eq.s32.totalorder %s29, 0
      %p75 = por %p73, %p74
      %p76 = scmp.ne.s32.totalorder %s65, %s68
      %p77 = scmp.eq.s32.totalorder %s34, 1
      %p78 = por %p76, %p77
      %p79 = scmp.ne.s32.totalorder %s68, %s69
      %p80 = scmp.eq.s32.totalorder %s34, 0
      %p81 = por %p79, %p80
      %p82 = scmp.ne.s32.totalorder %s68, %s69
      %p83 = scmp.eq.s32.totalorder %s35, 1
      %p84 = por %p82, %p83
      %p86 = scmp.ne.s32.totalorder %s69, %s85
      %p87 = scmp.eq.s32.totalorder %s35, 0
      %p88 = por %p86, %p87
      %s89 = ssub.s32 %s29, %s36
      %p90 = scmp.eq.s32.totalorder %s89, 0
      %s92 = sadd.s32 %s91, 1
      %s93 = scalar_select %p90, %s91, %s92
      %p96 = pneg %p90
      %p97 = scmp.eq.s32.totalorder %s29, 1
      %p98 = por %p96, %p97
      %p99 = scmp.ne.s32.totalorder %s91, %s94
      %p100 = scmp.eq.s32.totalorder %s29, 0
      %p101 = por %p99, %p100
      %p102 = scmp.ne.s32.totalorder %s91, %s94
      %p103 = scmp.eq.s32.totalorder %s34, 1
      %p104 = por %p102, %p103
      %p105 = scmp.ne.s32.totalorder %s94, %s95
      %p106 = scmp.eq.s32.totalorder %s34, 0
      %p107 = por %p105, %p106
      %p108 = scmp.ne.s32.totalorder %s94, %s95
      %p109 = scmp.eq.s32.totalorder %s35, 1
      %p110 = por %p108, %p109
      %p112 = scmp.ne.s32.totalorder %s95, %s111
      %p113 = scmp.eq.s32.totalorder %s35, 0
      %p114 = por %p112, %p113
      %s116 = sadd.s32 %s115, 1
      %p119 = scmp.eq.s32.totalorder %s29, 1
      %p120 = scmp.ne.s32.totalorder %s115, %s117
      %p121 = scmp.eq.s32.totalorder %s29, 0
      %p122 = por %p120, %p121
      %p123 = scmp.ne.s32.totalorder %s115, %s117
      %p124 = scmp.eq.s32.totalorder %s34, 1
      %p125 = por %p123, %p124
      %p126 = scmp.ne.s32.totalorder %s117, %s118
      %p127 = scmp.eq.s32.totalorder %s34, 0
      %p128 = por %p126, %p127
      %p129 = scmp.ne.s32.totalorder %s117, %s118
      %p130 = scmp.eq.s32.totalorder %s35, 1
      %p131 = por %p129, %p130
      %p133 = scmp.ne.s32.totalorder %s118, %s132
      %p134 = scmp.eq.s32.totalorder %s35, 0
      %p135 = por %p133, %p134
      %s137 = sadd.s32 %s136, 1
      %p140 = scmp.eq.s32.totalorder %s29, 1
      %p141 = scmp.ne.s32.totalorder %s136, %s138
      %p142 = scmp.eq.s32.totalorder %s29, 0
      %p143 = por %p141, %p142
      %p144 = scmp.ne.s32.totalorder %s136, %s138
      %p145 = scmp.eq.s32.totalorder %s34, 1
      %p146 = por %p144, %p145
      %p147 = scmp.ne.s32.totalorder %s138, %s139
      %p148 = scmp.eq.s32.totalorder %s34, 0
      %p149 = por %p147, %p148
      %p150 = scmp.ne.s32.totalorder %s138, %s139
      %p151 = scmp.eq.s32.totalorder %s35, 1
      %p152 = por %p150, %p151
      %p154 = scmp.ne.s32.totalorder %s139, %s153
      %p155 = scmp.eq.s32.totalorder %s35, 0
      %p156 = por %p154, %p155
      %s158 = sadd.s32 %s157, 1
      %p161 = scmp.eq.s32.totalorder %s29, 1
      %p162 = scmp.ne.s32.totalorder %s157, %s159
      %p163 = scmp.eq.s32.totalorder %s29, 0
      %p164 = por %p162, %p163
      %p165 = scmp.ne.s32.totalorder %s157, %s159
      %p166 = scmp.eq.s32.totalorder %s34, 1
      %p167 = por %p165, %p166
      %p168 = scmp.ne.s32.totalorder %s159, %s160
      %p169 = scmp.eq.s32.totalorder %s34, 0
      %p170 = por %p168, %p169
      %p171 = scmp.ne.s32.totalorder %s159, %s160
      %p172 = scmp.eq.s32.totalorder %s35, 1
      %p173 = por %p171, %p172
      %p175 = scmp.ne.s32.totalorder %s160, %s174
      %p176 = scmp.eq.s32.totalorder %s35, 0
      %p177 = por %p175, %p176
      %s179 = sadd.s32 %s178, 1
      %p182 = scmp.eq.s32.totalorder %s29, 1
      %p183 = scmp.ne.s32.totalorder %s178, %s180
      %p184 = scmp.eq.s32.totalorder %s29, 0
      %p185 = por %p183, %p184
      %p186 = scmp.ne.s32.totalorder %s178, %s180
      %p187 = scmp.eq.s32.totalorder %s34, 1
      %p188 = por %p186, %p187
      %p189 = scmp.ne.s32.totalorder %s180, %s181
      %p190 = scmp.eq.s32.totalorder %s34, 0
      %p191 = por %p189, %p190
      %p192 = scmp.ne.s32.totalorder %s180, %s181
      %p193 = scmp.eq.s32.totalorder %s35, 1
      %p194 = por %p192, %p193
      %p196 = scmp.ne.s32.totalorder %s181, %s195
      %p197 = scmp.eq.s32.totalorder %s35, 0
      %p198 = por %p196, %p197
      %s200 = sadd.s32 %s199, 1
      %p203 = scmp.eq.s32.totalorder %s29, 1
      %p204 = scmp.ne.s32.totalorder %s199, %s201
      %p205 = scmp.eq.s32.totalorder %s29, 0
      %p206 = por %p204, %p205
      %p207 = scmp.ne.s32.totalorder %s199, %s201
      %p208 = scmp.eq.s32.totalorder %s34, 1
      %p209 = por %p207, %p208
      %p210 = scmp.ne.s32.totalorder %s201, %s202
      %p211 = scmp.eq.s32.totalorder %s34, 0
      %p212 = por %p210, %p211
      %p213 = scmp.ne.s32.totalorder %s201, %s202
      %p214 = scmp.eq.s32.totalorder %s35, 1
      %p215 = por %p213, %p214
      %p217 = scmp.ne.s32.totalorder %s202, %s216
      %p218 = scmp.eq.s32.totalorder %s35, 0
      %p219 = por %p217, %p218
      %s221 = sadd.s32 %s220, 1
      %p224 = scmp.eq.s32.totalorder %s29, 1
      %p225 = scmp.ne.s32.totalorder %s220, %s222
      %p226 = scmp.eq.s32.totalorder %s29, 0
      %p227 = por %p225, %p226
      %p228 = scmp.ne.s32.totalorder %s220, %s222
      %p229 = scmp.eq.s32.totalorder %s34, 1
      %p230 = por %p228, %p229
      %p231 = scmp.ne.s32.totalorder %s222, %s223
      %p232 = scmp.eq.s32.totalorder %s34, 0
      %p233 = por %p231, %p232
      %p234 = scmp.ne.s32.totalorder %s222, %s223
      %p235 = scmp.eq.s32.totalorder %s35, 1
      %p236 = por %p234, %p235
      %p238 = scmp.ne.s32.totalorder %s223, %s237
      %p239 = scmp.eq.s32.totalorder %s35, 0
      %p240 = por %p238, %p239
      %s242 = sadd.s32 %s241, 1
      %p245 = scmp.eq.s32.totalorder %s29, 1
      %p246 = scmp.ne.s32.totalorder %s241, %s243
      %p247 = scmp.eq.s32.totalorder %s29, 0
      %p248 = por %p246, %p247
      %p249 = scmp.ne.s32.totalorder %s241, %s243
      %p250 = scmp.eq.s32.totalorder %s34, 1
      %p251 = por %p249, %p250
      %p252 = scmp.ne.s32.totalorder %s243, %s244
      %p253 = scmp.eq.s32.totalorder %s34, 0
      %p254 = por %p252, %p253
      %p255 = scmp.ne.s32.totalorder %s243, %s244
      %p256 = scmp.eq.s32.totalorder %s35, 1
      %p257 = por %p255, %p256
      %p259 = scmp.ne.s32.totalorder %s244, %s258
      %p260 = scmp.eq.s32.totalorder %s35, 0
      %p261 = por %p259, %p260
      %s263 = sadd.s32 %s262, 1
      %p266 = scmp.eq.s32.totalorder %s29, 1
      %p267 = scmp.ne.s32.totalorder %s262, %s264
      %p268 = scmp.eq.s32.totalorder %s29, 0
      %p269 = por %p267, %p268
      %p270 = scmp.ne.s32.totalorder %s262, %s264
      %p271 = scmp.eq.s32.totalorder %s34, 1
      %p272 = por %p270, %p271
      %p273 = scmp.ne.s32.totalorder %s264, %s265
      %p274 = scmp.eq.s32.totalorder %s34, 0
      %p275 = por %p273, %p274
      %p276 = scmp.ne.s32.totalorder %s264, %s265
      %p277 = scmp.eq.s32.totalorder %s35, 1
      %p278 = por %p276, %p277
      %p280 = scmp.ne.s32.totalorder %s265, %s279
      %p281 = scmp.eq.s32.totalorder %s35, 0
      %p282 = por %p280, %p281
      %s283 = ssub.s32 %s29, %s36
      %p284 = scmp.eq.s32.totalorder %s283, 0
      %s286 = sadd.s32 %s285, 1
      %s287 = scalar_select %p284, %s285, %s286
      %p290 = pneg %p284
      %p291 = scmp.eq.s32.totalorder %s29, 1
      %p292 = por %p290, %p291
      %p293 = scmp.ne.s32.totalorder %s285, %s288
      %p294 = scmp.eq.s32.totalorder %s29, 0
      %p295 = por %p293, %p294
      %p296 = scmp.ne.s32.totalorder %s285, %s288
      %p297 = scmp.eq.s32.totalorder %s34, 1
      %p298 = por %p296, %p297
      %p299 = scmp.ne.s32.totalorder %s288, %s289
      %p300 = scmp.eq.s32.totalorder %s34, 0
      %p301 = por %p299, %p300
      %p302 = scmp.ne.s32.totalorder %s288, %s289
      %p303 = scmp.eq.s32.totalorder %s35, 1
      %p304 = por %p302, %p303
      %p306 = scmp.ne.s32.totalorder %s289, %s305
      %p307 = scmp.eq.s32.totalorder %s35, 0
      %p308 = por %p306, %p307
      %p309 = scmp.le.s32.totalorder 1, %s29
      %p310 = scmp.lt.s32.totalorder %s29, 3
      %p311 = pnand %p309, %p310
      %p312 = pneg %p311
      // Predicated region
      $region9: #{tpu_custom_call.1} parent=5 // pred_check
        _
      $region10: #{tpu_custom_call.1} parent=5 // pred_check_branch
        %314 = sbr.rel (%p311) target = $region12
      $region11: #{tpu_custom_call.1} parent=5 // pred_region
        %s315 = ssub.s32 %s29, 1
        // Predicated region
        $region13: #{tpu_custom_call.1} parent=11 // pred_check
          %p316 = pneg %p128
        $region14: #{tpu_custom_call.1} parent=11 // pred_check_branch
          %318 = sbr.rel (%p316) target = $region16
        $region15: #{tpu_custom_call.1} parent=11 // pred_region
          %s320 = ssub.s32 1024, 1024
          %321 = vsyncadd [#allocation9], %s320
          %s322 = sshll.u32 [#allocation8], 4
          %s323 = int_to_ptr.vmem [resolvable:$true] %s322
          %328 = dma.hbm_to_vmem [thread:$0]  %s3, 1024, %s323, [#allocation9], 64, 64, 4
        $region16: #{tpu_custom_call.1} parent=11 // pred_fallthru
          _
        // Predicated region
        $region17: #{tpu_custom_call.1} parent=11 // pred_check
          %p329 = pneg %p149
        $region18: #{tpu_custom_call.1} parent=11 // pred_check_branch
          %331 = sbr.rel (%p329) target = $region20
        $region19: #{tpu_custom_call.1} parent=11 // pred_region
          %s333 = ssub.s32 2048, 2048
          %334 = vsyncadd [#allocation9], %s333
          %s335 = sshll.u32 [#allocation10], 4
          %s336 = int_to_ptr.vmem [resolvable:$true] %s335
          %341 = dma.hbm_to_vmem [thread:$0]  %s4, 2048, %s336, [#allocation9], 64, 64, 4
        $region20: #{tpu_custom_call.1} parent=11 // pred_fallthru
          _
        // Predicated region
        $region21: #{tpu_custom_call.1} parent=11 // pred_check
          %p342 = pneg %p170
        $region22: #{tpu_custom_call.1} parent=11 // pred_check_branch
          %344 = sbr.rel (%p342) target = $region24
        $region23: #{tpu_custom_call.1} parent=11 // pred_region
          %s346 = ssub.s32 1024, 1024
          %347 = vsyncadd [#allocation12], %s346
          %s348 = sshll.u32 [#allocation11], 4
          %s349 = int_to_ptr.vmem [resolvable:$true] %s348
          %354 = dma.hbm_to_vmem [thread:$0]  %s5, 1024, %s349, [#allocation12], 64, 64, 4
        $region24: #{tpu_custom_call.1} parent=11 // pred_fallthru
          _
        // Predicated region
        $region25: #{tpu_custom_call.1} parent=11 // pred_check
          %p355 = pneg %p191
        $region26: #{tpu_custom_call.1} parent=11 // pred_check_branch
          %357 = sbr.rel (%p355) target = $region28
        $region27: #{tpu_custom_call.1} parent=11 // pred_region
          %s359 = ssub.s32 1024, 1024
          %360 = vsyncadd [#allocation12], %s359
          %s361 = sshll.u32 [#allocation13], 4
          %s362 = int_to_ptr.vmem [resolvable:$true] %s361
          %367 = dma.hbm_to_vmem [thread:$0]  %s6, 1024, %s362, [#allocation12], 64, 64, 4
        $region28: #{tpu_custom_call.1} parent=11 // pred_fallthru
          _
        // Predicated region
        $region29: #{tpu_custom_call.1} parent=11 // pred_check
          %p368 = pneg %p212
        $region30: #{tpu_custom_call.1} parent=11 // pred_check_branch
          %370 = sbr.rel (%p368) target = $region32
        $region31: #{tpu_custom_call.1} parent=11 // pred_region
          %s372 = ssub.s32 1024, 1024
          %373 = vsyncadd [#allocation15], %s372
          %s374 = sshll.u32 [#allocation14], 4
          %s375 = int_to_ptr.vmem [resolvable:$true] %s374
          %380 = dma.hbm_to_vmem [thread:$0]  %s7, 1024, %s375, [#allocation15], 64, 64, 4
        $region32: #{tpu_custom_call.1} parent=11 // pred_fallthru
          _
        // Predicated region
        $region33: #{tpu_custom_call.1} parent=11 // pred_check
          %p381 = pneg %p233
        $region34: #{tpu_custom_call.1} parent=11 // pred_check_branch
          %383 = sbr.rel (%p381) target = $region36
        $region35: #{tpu_custom_call.1} parent=11 // pred_region
          _
        $region36: #{tpu_custom_call.1} parent=11 // pred_fallthru
          _
        // Predicated region
        $region37: #{tpu_custom_call.1} parent=11 // pred_check
          %p384 = pneg %p254
        $region38: #{tpu_custom_call.1} parent=11 // pred_check_branch
          %386 = sbr.rel (%p384) target = $region40
        $region39: #{tpu_custom_call.1} parent=11 // pred_region
          _
        $region40: #{tpu_custom_call.1} parent=11 // pred_fallthru
          _
        // Predicated region
        $region41: #{tpu_custom_call.1} parent=11 // pred_check
          %p387 = pneg %p275
        $region42: #{tpu_custom_call.1} parent=11 // pred_check_branch
          %389 = sbr.rel (%p387) target = $region44
        $region43: #{tpu_custom_call.1} parent=11 // pred_region
          _
        $region44: #{tpu_custom_call.1} parent=11 // pred_fallthru
          _
      $region12: #{tpu_custom_call.1} parent=5 // pred_fallthru
        _
      %p390 = scmp.lt.s32.totalorder %s29, 2
      // Predicated region
      $region45: #{tpu_custom_call.1} parent=5 // pred_check
        %p391 = pneg %p390
      $region46: #{tpu_custom_call.1} parent=5 // pred_check_branch
        %393 = sbr.rel (%p391) target = $region48
      $region47: #{tpu_custom_call.1} parent=5 // pred_region
        // Predicated region
        $region49: #{tpu_custom_call.1} parent=47 // pred_check
          %p394 = pneg %p49
        $region50: #{tpu_custom_call.1} parent=47 // pred_check_branch
          %396 = sbr.rel (%p394) target = $region52
        $region51: #{tpu_custom_call.1} parent=47 // pred_region
          %s397 = sand.u32 %s39, 1
          %s398 = scalar_lea.sflag [#allocation3], %s397
          %s399 = sand.u32 %s39, 1
          %s400 = smul.addr %s399, 64
          %s401 = scalar_lea.vmem [#allocation2], %s400
          %s402 = smul.u32 16, %s29
          %s404 = ssub.s32 1024, 1024
          %405 = vsyncadd %s398, %s404
          %s406 = smul.addr %s402, 64
          %s407 = scalar_lea.hbm %s0, %s406
          %s408 = sshll.u32 %s401, 4
          %s409 = int_to_ptr.vmem [resolvable:$true] %s408
          %414 = dma.hbm_to_vmem [thread:$0]  %s407, 1024, %s409, %s398, 64, 64, 4
        $region52: #{tpu_custom_call.1} parent=47 // pred_fallthru
          _
        // Predicated region
        $region53: #{tpu_custom_call.1} parent=47 // pred_check
          %p415 = pneg %p75
        $region54: #{tpu_custom_call.1} parent=47 // pred_check_branch
          %417 = sbr.rel (%p415) target = $region56
        $region55: #{tpu_custom_call.1} parent=47 // pred_region
          #allocation18 [shape = 'u32[6]{0}', space=smem, size = 0x18, scoped, tag = 'DMA stride descriptor']
          %s418 = sand.u32 %s29, 1
          %s419 = scalar_lea.sflag [#allocation6], %s418
          %s420 = sand.u32 %s65, 1
          %s421 = smul.addr %s420, 896
          %s422 = scalar_lea.vmem [#allocation5], %s421
          %s423 = smul.u32 16, %s29
          %s425 = ssub.s32 14336, 14336
          %426 = vsyncadd %s419, %s425
          %s427 = smul.addr %s423, 2
          %s428 = smul.addr %s427, 64
          %s429 = scalar_lea.hbm %s1, %s428
          %s431 = sshll.u32 1, 14
          %s432 = sxor.u32 4294967295, %s431
          %s434 = sld [smem:[#allocation0]]
          %s435 = sadd.s32 2, %s434
          %s437 = sshll.u32 7, 26
          %s438 = sxor.u32 4294967295, %s437
          %s439 = sand.u32 0, %s438
          %s440 = sshll.u32 %s435, 26
          %s441 = sor.u32 %s439, %s440
          %s442 = sshll.u32 %s422, 4
          %s443 = int_to_ptr.vmem [resolvable:$true] %s442
          %449 = sst [smem:[#allocation18]] 4096
          %s450 = scalar_lea.smem [#allocation18], 1
          %451 = sst [smem:[%s450]] 2048
          %s452 = scalar_lea.smem [#allocation18], 2
          %453 = sst [smem:[%s452]] 16
          %s454 = scalar_lea.smem [#allocation18], 3
          %455 = sst [smem:[%s454]] 128
          %s456 = scalar_lea.smem [#allocation18], 4
          %457 = sst [smem:[%s456]] 128
          %s458 = scalar_lea.smem [#allocation18], 5
          %459 = sst [smem:[%s458]] 8
          %461 = dma.general %s429, 14336, %s443, %s419, 131072, [#allocation18], %s441, 0
        $region56: #{tpu_custom_call.1} parent=47 // pred_fallthru
          _
        // Predicated region
        $region57: #{tpu_custom_call.1} parent=47 // pred_check
          %p462 = pneg %p101
        $region58: #{tpu_custom_call.1} parent=47 // pred_check_branch
          %464 = sbr.rel (%p462) target = $region60
        $region59: #{tpu_custom_call.1} parent=47 // pred_region
          %s465 = sand.u32 %s29, 1
          %s466 = scalar_lea.sflag [#allocation6], %s465
          %s467 = sand.u32 %s91, 1
          %s468 = smul.addr %s467, 64
          %s469 = scalar_lea.vmem [#allocation7], %s468
          %s470 = smul.u32 16, %s29
          %s472 = ssub.s32 1024, 1024
          %473 = vsyncadd %s466, %s472
          %s474 = smul.addr %s470, 64
          %s475 = scalar_lea.hbm %s2, %s474
          %s476 = sshll.u32 %s469, 4
          %s477 = int_to_ptr.vmem [resolvable:$true] %s476
          %482 = dma.hbm_to_vmem [thread:$0]  %s475, 1024, %s477, %s466, 64, 64, 4
        $region60: #{tpu_custom_call.1} parent=47 // pred_fallthru
          _
      $region48: #{tpu_custom_call.1} parent=5 // pred_fallthru
        _
      %p483 = scmp.le.s32.totalorder 1, %s29
      %p484 = scmp.lt.s32.totalorder %s29, 3
      %p485 = pnand %p483, %p484
      %p486 = pneg %p485
      // Predicated region
      $region61: #{tpu_custom_call.1} parent=5 // pred_check
        _
      $region62: #{tpu_custom_call.1} parent=5 // pred_check_branch
        %488 = sbr.rel (%p485) target = $region64
      $region63: #{tpu_custom_call.1} parent=5 // pred_region
        %s489 = ssub.s32 %s29, 1
        %s490 = sand.u32 %s42, 1
        %s491 = scalar_lea.sflag [#allocation3], %s490
        %s492 = sand.u32 %s42, 1
        %s493 = smul.addr %s492, 64
        %s494 = scalar_lea.vmem [#allocation2], %s493
        // Predicated region
        $region65: #{tpu_custom_call.1} parent=63 // pred_check
          %p495 = pneg %p55
        $region66: #{tpu_custom_call.1} parent=63 // pred_check_branch
          %497 = sbr.rel (%p495) target = $region68
        $region67: #{tpu_custom_call.1} parent=63 // pred_region
          %498 = dma.done %s491, 1024
        $region68: #{tpu_custom_call.1} parent=63 // pred_fallthru
          _
        %s499 = sand.u32 %s34, 1
        %s500 = scalar_lea.sflag [#allocation6], %s499
        %s501 = sand.u32 %s68, 1
        %s502 = smul.addr %s501, 896
        %s503 = scalar_lea.vmem [#allocation5], %s502
        // Predicated region
        $region69: #{tpu_custom_call.1} parent=63 // pred_check
          %p504 = pneg %p81
        $region70: #{tpu_custom_call.1} parent=63 // pred_check_branch
          %506 = sbr.rel (%p504) target = $region72
        $region71: #{tpu_custom_call.1} parent=63 // pred_region
          %507 = dma.done %s500, 14336
        $region72: #{tpu_custom_call.1} parent=63 // pred_fallthru
          _
        %s508 = sand.u32 %s34, 1
        %s509 = scalar_lea.sflag [#allocation6], %s508
        %s510 = sand.u32 %s94, 1
        %s511 = smul.addr %s510, 64
        %s512 = scalar_lea.vmem [#allocation7], %s511
        // Predicated region
        $region73: #{tpu_custom_call.1} parent=63 // pred_check
          %p513 = pneg %p107
        $region74: #{tpu_custom_call.1} parent=63 // pred_check_branch
          %515 = sbr.rel (%p513) target = $region76
        $region75: #{tpu_custom_call.1} parent=63 // pred_region
          %516 = dma.done %s509, 1024
        $region76: #{tpu_custom_call.1} parent=63 // pred_fallthru
          _
        // Predicated region
        $region77: #{tpu_custom_call.1} parent=63 // pred_check
          %p517 = pneg %p128
        $region78: #{tpu_custom_call.1} parent=63 // pred_check_branch
          %519 = sbr.rel (%p517) target = $region80
        $region79: #{tpu_custom_call.1} parent=63 // pred_region
          %520 = dma.done [#allocation9], 1024
        $region80: #{tpu_custom_call.1} parent=63 // pred_fallthru
          _
        // Predicated region
        $region81: #{tpu_custom_call.1} parent=63 // pred_check
          %p521 = pneg %p149
        $region82: #{tpu_custom_call.1} parent=63 // pred_check_branch
          %523 = sbr.rel (%p521) target = $region84
        $region83: #{tpu_custom_call.1} parent=63 // pred_region
          %524 = dma.done [#allocation9], 2048
        $region84: #{tpu_custom_call.1} parent=63 // pred_fallthru
          _
        // Predicated region
        $region85: #{tpu_custom_call.1} parent=63 // pred_check
          %p525 = pneg %p170
        $region86: #{tpu_custom_call.1} parent=63 // pred_check_branch
          %527 = sbr.rel (%p525) target = $region88
        $region87: #{tpu_custom_call.1} parent=63 // pred_region
          %528 = dma.done [#allocation12], 1024
        $region88: #{tpu_custom_call.1} parent=63 // pred_fallthru
          _
        // Predicated region
        $region89: #{tpu_custom_call.1} parent=63 // pred_check
          %p529 = pneg %p191
        $region90: #{tpu_custom_call.1} parent=63 // pred_check_branch
          %531 = sbr.rel (%p529) target = $region92
        $region91: #{tpu_custom_call.1} parent=63 // pred_region
          %532 = dma.done [#allocation12], 1024
        $region92: #{tpu_custom_call.1} parent=63 // pred_fallthru
          _
        // Predicated region
        $region93: #{tpu_custom_call.1} parent=63 // pred_check
          %p533 = pneg %p212
        $region94: #{tpu_custom_call.1} parent=63 // pred_check_branch
          %535 = sbr.rel (%p533) target = $region96
        $region95: #{tpu_custom_call.1} parent=63 // pred_region
          %536 = dma.done [#allocation15], 1024
        $region96: #{tpu_custom_call.1} parent=63 // pred_fallthru
          _
        %s537 = sand.u32 %s42, 1
        %s538 = scalar_lea.sflag [#allocation3], %s537
        %s539 = sand.u32 %s42, 1
        %s540 = smul.addr %s539, 64
        %s541 = scalar_lea.vmem [#allocation2], %s540
        %p542 = pneg %p55
        %p543 = pneg %p52
        %s544 = sand.u32 %s34, 1
        %s545 = scalar_lea.sflag [#allocation6], %s544
        %s546 = sand.u32 %s68, 1
        %s547 = smul.addr %s546, 896
        %s548 = scalar_lea.vmem [#allocation5], %s547
        %p549 = pneg %p81
        %p550 = pneg %p78
        %s551 = sand.u32 %s34, 1
        %s552 = scalar_lea.sflag [#allocation6], %s551
        %s553 = sand.u32 %s94, 1
        %s554 = smul.addr %s553, 64
        %s555 = scalar_lea.vmem [#allocation7], %s554
        %p556 = pneg %p107
        %p557 = pneg %p104
        %p558 = pneg %p128
        %p559 = pneg %p125
        %p560 = pneg %p149
        %p561 = pneg %p146
        %p562 = pneg %p170
        %p563 = pneg %p167
        %p564 = pneg %p191
        %p565 = pneg %p188
        %p566 = pneg %p212
        %p567 = pneg %p209
        %p568 = pneg %p233
        %p569 = pneg %p230
        %p570 = pneg %p254
        %p571 = pneg %p251
        %p572 = pneg %p275
        %p573 = pneg %p272
        %p574 = pneg %p301
        %p575 = pneg %p298
        %s576 = sand.u32 %s288, 1
        %s577 = scalar_lea.sflag [#allocation4], %s576
        %s578 = sand.u32 %s288, 1
        %s579 = smul.addr %s578, 64
        %s580 = scalar_lea.vmem [#allocation16], %s579
        %s581 = smul.u32 16, %s34
        %s582 = smul.u32 16, %s34
        %s583 = smul.u32 16, %s34
        %s584 = smul.u32 16, %s34
        %v586 = vld [vmem:[%s503] sm:$0xff]
        %v587 = vld [vmem:[%s503 + $0x8] sm:$0xff]
        %v588 = vld [vmem:[%s503 + $0x10] sm:$0xff]
        %v589 = vld [vmem:[%s503 + $0x18] sm:$0xff]
        %v590 = vld [vmem:[%s503 + $0x20] sm:$0xff]
        %v591 = vld [vmem:[%s503 + $0x28] sm:$0xff]
        %v592 = vld [vmem:[%s503 + $0x30] sm:$0xff]
        %v593 = vld [vmem:[%s503 + $0x38] sm:$0xff]
        %v594 = vld [vmem:[%s503 + $0x40] sm:$0xff]
        %v595 = vld [vmem:[%s503 + $0x48] sm:$0xff]
        %v596 = vld [vmem:[%s503 + $0x50] sm:$0xff]
        %v597 = vld [vmem:[%s503 + $0x58] sm:$0xff]
        %v598 = vld [vmem:[%s503 + $0x60] sm:$0xff]
        %v599 = vld [vmem:[%s503 + $0x68] sm:$0xff]
        %v600 = vld [vmem:[%s503 + $0x70] sm:$0xff]
        %v601 = vld [vmem:[%s503 + $0x78] sm:$0xff]
        %v602 = vld [vmem:[%s503 + $0x80] sm:$0xff]
        %v603 = vld [vmem:[%s503 + $0x88] sm:$0xff]
        %v604 = vld [vmem:[%s503 + $0x90] sm:$0xff]
        %v605 = vld [vmem:[%s503 + $0x98] sm:$0xff]
        %v606 = vld [vmem:[%s503 + $0xa0] sm:$0xff]
        %v607 = vld [vmem:[%s503 + $0xa8] sm:$0xff]
        %v608 = vld [vmem:[%s503 + $0xb0] sm:$0xff]
        %v609 = vld [vmem:[%s503 + $0xb8] sm:$0xff]
        %v610 = vld [vmem:[%s503 + $0xc0] sm:$0xff]
        %v611 = vld [vmem:[%s503 + $0xc8] sm:$0xff]
        %v612 = vld [vmem:[%s503 + $0xd0] sm:$0xff]
        %v613 = vld [vmem:[%s503 + $0xd8] sm:$0xff]
        %v614 = vld [vmem:[%s503 + $0xe0] sm:$0xff]
        %v615 = vld [vmem:[%s503 + $0xe8] sm:$0xff]
        %v616 = vld [vmem:[%s503 + $0xf0] sm:$0xff]
        %v617 = vld [vmem:[%s503 + $0xf8] sm:$0xff]
        %v618 = vld [vmem:[%s503 + $0x100] sm:$0xff]
        %v619 = vld [vmem:[%s503 + $0x108] sm:$0xff]
        %v620 = vld [vmem:[%s503 + $0x110] sm:$0xff]
        %v621 = vld [vmem:[%s503 + $0x118] sm:$0xff]
        %v622 = vld [vmem:[%s503 + $0x120] sm:$0xff]
        %v623 = vld [vmem:[%s503 + $0x128] sm:$0xff]
        %v624 = vld [vmem:[%s503 + $0x130] sm:$0xff]
        %v625 = vld [vmem:[%s503 + $0x138] sm:$0xff]
        %v626 = vld [vmem:[%s503 + $0x140] sm:$0xff]
        %v627 = vld [vmem:[%s503 + $0x148] sm:$0xff]
        %v628 = vld [vmem:[%s503 + $0x150] sm:$0xff]
        %v629 = vld [vmem:[%s503 + $0x158] sm:$0xff]
        %v630 = vld [vmem:[%s503 + $0x160] sm:$0xff]
        %v631 = vld [vmem:[%s503 + $0x168] sm:$0xff]
        %v632 = vld [vmem:[%s503 + $0x170] sm:$0xff]
        %v633 = vld [vmem:[%s503 + $0x178] sm:$0xff]
        %v634 = vld [vmem:[%s503 + $0x180] sm:$0xff]
        %v635 = vld [vmem:[%s503 + $0x188] sm:$0xff]
        %v636 = vld [vmem:[%s503 + $0x190] sm:$0xff]
        %v637 = vld [vmem:[%s503 + $0x198] sm:$0xff]
        %v638 = vld [vmem:[%s503 + $0x1a0] sm:$0xff]
        %v639 = vld [vmem:[%s503 + $0x1a8] sm:$0xff]
        %v640 = vld [vmem:[%s503 + $0x1b0] sm:$0xff]
        %v641 = vld [vmem:[%s503 + $0x1b8] sm:$0xff]
        %v642 = vld [vmem:[%s503 + $0x1c0] sm:$0xff]
        %v643 = vld [vmem:[%s503 + $0x1c8] sm:$0xff]
        %v644 = vld [vmem:[%s503 + $0x1d0] sm:$0xff]
        %v645 = vld [vmem:[%s503 + $0x1d8] sm:$0xff]
        %v646 = vld [vmem:[%s503 + $0x1e0] sm:$0xff]
        %v647 = vld [vmem:[%s503 + $0x1e8] sm:$0xff]
        %v648 = vld [vmem:[%s503 + $0x1f0] sm:$0xff]
        %v649 = vld [vmem:[%s503 + $0x1f8] sm:$0xff]
        %v650 = vld [vmem:[%s503 + $0x200] sm:$0xff]
        %v651 = vld [vmem:[%s503 + $0x208] sm:$0xff]
        %v652 = vld [vmem:[%s503 + $0x210] sm:$0xff]
        %v653 = vld [vmem:[%s503 + $0x218] sm:$0xff]
        %v654 = vld [vmem:[%s503 + $0x220] sm:$0xff]
        %v655 = vld [vmem:[%s503 + $0x228] sm:$0xff]
        %v656 = vld [vmem:[%s503 + $0x230] sm:$0xff]
        %v657 = vld [vmem:[%s503 + $0x238] sm:$0xff]
        %v658 = vld [vmem:[%s503 + $0x240] sm:$0xff]
        %v659 = vld [vmem:[%s503 + $0x248] sm:$0xff]
        %v660 = vld [vmem:[%s503 + $0x250] sm:$0xff]
        %v661 = vld [vmem:[%s503 + $0x258] sm:$0xff]
        %v662 = vld [vmem:[%s503 + $0x260] sm:$0xff]
        %v663 = vld [vmem:[%s503 + $0x268] sm:$0xff]
        %v664 = vld [vmem:[%s503 + $0x270] sm:$0xff]
        %v665 = vld [vmem:[%s503 + $0x278] sm:$0xff]
        %v666 = vld [vmem:[%s503 + $0x280] sm:$0xff]
        %v667 = vld [vmem:[%s503 + $0x288] sm:$0xff]
        %v668 = vld [vmem:[%s503 + $0x290] sm:$0xff]
        %v669 = vld [vmem:[%s503 + $0x298] sm:$0xff]
        %v670 = vld [vmem:[%s503 + $0x2a0] sm:$0xff]
        %v671 = vld [vmem:[%s503 + $0x2a8] sm:$0xff]
        %v672 = vld [vmem:[%s503 + $0x2b0] sm:$0xff]
        %v673 = vld [vmem:[%s503 + $0x2b8] sm:$0xff]
        %v674 = vld [vmem:[%s503 + $0x2c0] sm:$0xff]
        %v675 = vld [vmem:[%s503 + $0x2c8] sm:$0xff]
        %v676 = vld [vmem:[%s503 + $0x2d0] sm:$0xff]
        %v677 = vld [vmem:[%s503 + $0x2d8] sm:$0xff]
        %v678 = vld [vmem:[%s503 + $0x2e0] sm:$0xff]
        %v679 = vld [vmem:[%s503 + $0x2e8] sm:$0xff]
        %v680 = vld [vmem:[%s503 + $0x2f0] sm:$0xff]
        %v681 = vld [vmem:[%s503 + $0x2f8] sm:$0xff]
        %v682 = vld [vmem:[%s503 + $0x300] sm:$0xff]
        %v683 = vld [vmem:[%s503 + $0x308] sm:$0xff]
        %v684 = vld [vmem:[%s503 + $0x310] sm:$0xff]
        %v685 = vld [vmem:[%s503 + $0x318] sm:$0xff]
        %v686 = vld [vmem:[%s503 + $0x320] sm:$0xff]
        %v687 = vld [vmem:[%s503 + $0x328] sm:$0xff]
        %v688 = vld [vmem:[%s503 + $0x330] sm:$0xff]
        %v689 = vld [vmem:[%s503 + $0x338] sm:$0xff]
        %v690 = vld [vmem:[%s503 + $0x340] sm:$0xff]
        %v691 = vld [vmem:[%s503 + $0x348] sm:$0xff]
        %v692 = vld [vmem:[%s503 + $0x350] sm:$0xff]
        %v693 = vld [vmem:[%s503 + $0x358] sm:$0xff]
        %v694 = vld [vmem:[%s503 + $0x360] sm:$0xff]
        %v695 = vld [vmem:[%s503 + $0x368] sm:$0xff]
        %v696 = vld [vmem:[%s503 + $0x370] sm:$0xff]
        %v697 = vld [vmem:[%s503 + $0x378] sm:$0xff]
        %v698 = vld [vmem:[#allocation10] sm:$0xf]
        %v699 = vld [vmem:[#allocation10 + $0x4] sm:$0xf]
        %v700 = vld [vmem:[#allocation10 + $0x8] sm:$0xf]
        %v701 = vld [vmem:[#allocation10 + $0xc] sm:$0xf]
        %v702 = vld [vmem:[#allocation10 + $0x10] sm:$0xf]
        %v703 = vld [vmem:[#allocation10 + $0x14] sm:$0xf]
        %v704 = vld [vmem:[#allocation10 + $0x18] sm:$0xf]
        %v705 = vld [vmem:[#allocation10 + $0x1c] sm:$0xf]
        %v706 = vld [vmem:[#allocation10 + $0x20] sm:$0xf]
        %v707 = vld [vmem:[#allocation10 + $0x24] sm:$0xf]
        %v708 = vld [vmem:[#allocation10 + $0x28] sm:$0xf]
        %v709 = vld [vmem:[#allocation10 + $0x2c] sm:$0xf]
        %v710 = vld [vmem:[#allocation10 + $0x30] sm:$0xf]
        %v711 = vld [vmem:[#allocation10 + $0x34] sm:$0xf]
        %v712 = vld [vmem:[#allocation10 + $0x38] sm:$0xf]
        %v713 = vld [vmem:[#allocation10 + $0x3c] sm:$0xf]
        %v714 = vld [vmem:[#allocation10 + $0x40] sm:$0xf]
        %v715 = vld [vmem:[#allocation10 + $0x44] sm:$0xf]
        %v716 = vld [vmem:[#allocation10 + $0x48] sm:$0xf]
        %v717 = vld [vmem:[#allocation10 + $0x4c] sm:$0xf]
        %v718 = vld [vmem:[#allocation10 + $0x50] sm:$0xf]
        %v719 = vld [vmem:[#allocation10 + $0x54] sm:$0xf]
        %v720 = vld [vmem:[#allocation10 + $0x58] sm:$0xf]
        %v721 = vld [vmem:[#allocation10 + $0x5c] sm:$0xf]
        %v722 = vld [vmem:[#allocation10 + $0x60] sm:$0xf]
        %v723 = vld [vmem:[#allocation10 + $0x64] sm:$0xf]
        %v724 = vld [vmem:[#allocation10 + $0x68] sm:$0xf]
        %v725 = vld [vmem:[#allocation10 + $0x6c] sm:$0xf]
        %v726 = vld [vmem:[#allocation10 + $0x70] sm:$0xf]
        %v727 = vld [vmem:[#allocation10 + $0x74] sm:$0xf]
        %v728 = vld [vmem:[#allocation10 + $0x78] sm:$0xf]
        %v729 = vld [vmem:[#allocation10 + $0x7c] sm:$0xf]
        %v842 = vunpack.c.l.b16 %v586
        %v843 = vunpack.c.h.b16 %v586
        %v844 = vunpack.c.l.b16 %v587
        %v845 = vunpack.c.h.b16 %v587
        %v846 = vunpack.c.l.b16 %v588
        %v847 = vunpack.c.h.b16 %v588
        %v848 = vunpack.c.l.b16 %v589
        %v849 = vunpack.c.h.b16 %v589
        %v850 = vunpack.c.l.b16 %v590
        %v851 = vunpack.c.h.b16 %v590
        %v852 = vunpack.c.l.b16 %v591
        %v853 = vunpack.c.h.b16 %v591
        %v854 = vunpack.c.l.b16 %v592
        %v855 = vunpack.c.h.b16 %v592
        %v856 = vunpack.c.l.b16 %v593
        %v857 = vunpack.c.h.b16 %v593
        %v858 = vunpack.c.l.b16 %v594
        %v859 = vunpack.c.h.b16 %v594
        %v860 = vunpack.c.l.b16 %v595
        %v861 = vunpack.c.h.b16 %v595
        %v862 = vunpack.c.l.b16 %v596
        %v863 = vunpack.c.h.b16 %v596
        %v864 = vunpack.c.l.b16 %v597
        %v865 = vunpack.c.h.b16 %v597
        %v866 = vunpack.c.l.b16 %v598
        %v867 = vunpack.c.h.b16 %v598
        %v868 = vunpack.c.l.b16 %v599
        %v869 = vunpack.c.h.b16 %v599
        %v870 = vunpack.c.l.b16 %v600
        %v871 = vunpack.c.h.b16 %v600
        %v872 = vunpack.c.l.b16 %v601
        %v873 = vunpack.c.h.b16 %v601
        %v874 = vunpack.c.l.b16 %v602
        %v875 = vunpack.c.h.b16 %v602
        %v876 = vunpack.c.l.b16 %v603
        %v877 = vunpack.c.h.b16 %v603
        %v878 = vunpack.c.l.b16 %v604
        %v879 = vunpack.c.h.b16 %v604
        %v880 = vunpack.c.l.b16 %v605
        %v881 = vunpack.c.h.b16 %v605
        %v882 = vunpack.c.l.b16 %v606
        %v883 = vunpack.c.h.b16 %v606
        %v884 = vunpack.c.l.b16 %v607
        %v885 = vunpack.c.h.b16 %v607
        %v886 = vunpack.c.l.b16 %v608
        %v887 = vunpack.c.h.b16 %v608
        %v888 = vunpack.c.l.b16 %v609
        %v889 = vunpack.c.h.b16 %v609
        %v890 = vunpack.c.l.b16 %v610
        %v891 = vunpack.c.h.b16 %v610
        %v892 = vunpack.c.l.b16 %v611
        %v893 = vunpack.c.h.b16 %v611
        %v894 = vunpack.c.l.b16 %v612
        %v895 = vunpack.c.h.b16 %v612
        %v896 = vunpack.c.l.b16 %v613
        %v897 = vunpack.c.h.b16 %v613
        %v898 = vunpack.c.l.b16 %v614
        %v899 = vunpack.c.h.b16 %v614
        %v900 = vunpack.c.l.b16 %v615
        %v901 = vunpack.c.h.b16 %v615
        %v902 = vunpack.c.l.b16 %v616
        %v903 = vunpack.c.h.b16 %v616
        %v904 = vunpack.c.l.b16 %v617
        %v905 = vunpack.c.h.b16 %v617
        %v906 = vunpack.c.l.b16 %v618
        %v907 = vunpack.c.h.b16 %v618
        %v908 = vunpack.c.l.b16 %v619
        %v909 = vunpack.c.h.b16 %v619
        %v910 = vunpack.c.l.b16 %v620
        %v911 = vunpack.c.h.b16 %v620
        %v912 = vunpack.c.l.b16 %v621
        %v913 = vunpack.c.h.b16 %v621
        %v914 = vunpack.c.l.b16 %v622
        %v915 = vunpack.c.h.b16 %v622
        %v916 = vunpack.c.l.b16 %v623
        %v917 = vunpack.c.h.b16 %v623
        %v918 = vunpack.c.l.b16 %v624
        %v919 = vunpack.c.h.b16 %v624
        %v920 = vunpack.c.l.b16 %v625
        %v921 = vunpack.c.h.b16 %v625
        %v922 = vunpack.c.l.b16 %v626
        %v923 = vunpack.c.h.b16 %v626
        %v924 = vunpack.c.l.b16 %v627
        %v925 = vunpack.c.h.b16 %v627
        %v926 = vunpack.c.l.b16 %v628
        %v927 = vunpack.c.h.b16 %v628
        %v928 = vunpack.c.l.b16 %v629
        %v929 = vunpack.c.h.b16 %v629
        %v930 = vunpack.c.l.b16 %v630
        %v931 = vunpack.c.h.b16 %v630
        %v932 = vunpack.c.l.b16 %v631
        %v933 = vunpack.c.h.b16 %v631
        %v934 = vunpack.c.l.b16 %v632
        %v935 = vunpack.c.h.b16 %v632
        %v936 = vunpack.c.l.b16 %v633
        %v937 = vunpack.c.h.b16 %v633
        %v938 = vunpack.c.l.b16 %v634
        %v939 = vunpack.c.h.b16 %v634
        %v940 = vunpack.c.l.b16 %v635
        %v941 = vunpack.c.h.b16 %v635
        %v942 = vunpack.c.l.b16 %v636
        %v943 = vunpack.c.h.b16 %v636
        %v944 = vunpack.c.l.b16 %v637
        %v945 = vunpack.c.h.b16 %v637
        %v946 = vunpack.c.l.b16 %v638
        %v947 = vunpack.c.h.b16 %v638
        %v948 = vunpack.c.l.b16 %v639
        %v949 = vunpack.c.h.b16 %v639
        %v950 = vunpack.c.l.b16 %v640
        %v951 = vunpack.c.h.b16 %v640
        %v952 = vunpack.c.l.b16 %v641
        %v953 = vunpack.c.h.b16 %v641
        %v954 = vunpack.c.l.b16 %v642
        %v955 = vunpack.c.h.b16 %v642
        %v956 = vunpack.c.l.b16 %v643
        %v957 = vunpack.c.h.b16 %v643
        %v958 = vunpack.c.l.b16 %v644
        %v959 = vunpack.c.h.b16 %v644
        %v960 = vunpack.c.l.b16 %v645
        %v961 = vunpack.c.h.b16 %v645
        %v962 = vunpack.c.l.b16 %v646
        %v963 = vunpack.c.h.b16 %v646
        %v964 = vunpack.c.l.b16 %v647
        %v965 = vunpack.c.h.b16 %v647
        %v966 = vunpack.c.l.b16 %v648
        %v967 = vunpack.c.h.b16 %v648
        %v968 = vunpack.c.l.b16 %v649
        %v969 = vunpack.c.h.b16 %v649
        %v970 = vunpack.c.l.b16 %v650
        %v971 = vunpack.c.h.b16 %v650
        %v972 = vunpack.c.l.b16 %v651
        %v973 = vunpack.c.h.b16 %v651
        %v974 = vunpack.c.l.b16 %v652
        %v975 = vunpack.c.h.b16 %v652
        %v976 = vunpack.c.l.b16 %v653
        %v977 = vunpack.c.h.b16 %v653
        %v978 = vunpack.c.l.b16 %v654
        %v979 = vunpack.c.h.b16 %v654
        %v980 = vunpack.c.l.b16 %v655
        %v981 = vunpack.c.h.b16 %v655
        %v982 = vunpack.c.l.b16 %v656
        %v983 = vunpack.c.h.b16 %v656
        %v984 = vunpack.c.l.b16 %v657
        %v985 = vunpack.c.h.b16 %v657
        %v986 = vunpack.c.l.b16 %v658
        %v987 = vunpack.c.h.b16 %v658
        %v988 = vunpack.c.l.b16 %v659
        %v989 = vunpack.c.h.b16 %v659
        %v990 = vunpack.c.l.b16 %v660
        %v991 = vunpack.c.h.b16 %v660
        %v992 = vunpack.c.l.b16 %v661
        %v993 = vunpack.c.h.b16 %v661
        %v994 = vunpack.c.l.b16 %v662
        %v995 = vunpack.c.h.b16 %v662
        %v996 = vunpack.c.l.b16 %v663
        %v997 = vunpack.c.h.b16 %v663
        %v998 = vunpack.c.l.b16 %v664
        %v999 = vunpack.c.h.b16 %v664
        %v1000 = vunpack.c.l.b16 %v665
        %v1001 = vunpack.c.h.b16 %v665
        %v1002 = vunpack.c.l.b16 %v666
        %v1003 = vunpack.c.h.b16 %v666
        %v1004 = vunpack.c.l.b16 %v667
        %v1005 = vunpack.c.h.b16 %v667
        %v1006 = vunpack.c.l.b16 %v668
        %v1007 = vunpack.c.h.b16 %v668
        %v1008 = vunpack.c.l.b16 %v669
        %v1009 = vunpack.c.h.b16 %v669
        %v1010 = vunpack.c.l.b16 %v670
        %v1011 = vunpack.c.h.b16 %v670
        %v1012 = vunpack.c.l.b16 %v671
        %v1013 = vunpack.c.h.b16 %v671
        %v1014 = vunpack.c.l.b16 %v672
        %v1015 = vunpack.c.h.b16 %v672
        %v1016 = vunpack.c.l.b16 %v673
        %v1017 = vunpack.c.h.b16 %v673
        %v1018 = vunpack.c.l.b16 %v674
        %v1019 = vunpack.c.h.b16 %v674
        %v1020 = vunpack.c.l.b16 %v675
        %v1021 = vunpack.c.h.b16 %v675
        %v1022 = vunpack.c.l.b16 %v676
        %v1023 = vunpack.c.h.b16 %v676
        %v1024 = vunpack.c.l.b16 %v677
        %v1025 = vunpack.c.h.b16 %v677
        %v1026 = vunpack.c.l.b16 %v678
        %v1027 = vunpack.c.h.b16 %v678
        %v1028 = vunpack.c.l.b16 %v679
        %v1029 = vunpack.c.h.b16 %v679
        %v1030 = vunpack.c.l.b16 %v680
        %v1031 = vunpack.c.h.b16 %v680
        %v1032 = vunpack.c.l.b16 %v681
        %v1033 = vunpack.c.h.b16 %v681
        %v1034 = vunpack.c.l.b16 %v682
        %v1035 = vunpack.c.h.b16 %v682
        %v1036 = vunpack.c.l.b16 %v683
        %v1037 = vunpack.c.h.b16 %v683
        %v1038 = vunpack.c.l.b16 %v684
        %v1039 = vunpack.c.h.b16 %v684
        %v1040 = vunpack.c.l.b16 %v685
        %v1041 = vunpack.c.h.b16 %v685
        %v1042 = vunpack.c.l.b16 %v686
        %v1043 = vunpack.c.h.b16 %v686
        %v1044 = vunpack.c.l.b16 %v687
        %v1045 = vunpack.c.h.b16 %v687
        %v1046 = vunpack.c.l.b16 %v688
        %v1047 = vunpack.c.h.b16 %v688
        %v1048 = vunpack.c.l.b16 %v689
        %v1049 = vunpack.c.h.b16 %v689
        %v1050 = vunpack.c.l.b16 %v690
        %v1051 = vunpack.c.h.b16 %v690
        %v1052 = vunpack.c.l.b16 %v691
        %v1053 = vunpack.c.h.b16 %v691
        %v1054 = vunpack.c.l.b16 %v692
        %v1055 = vunpack.c.h.b16 %v692
        %v1056 = vunpack.c.l.b16 %v693
        %v1057 = vunpack.c.h.b16 %v693
        %v1058 = vunpack.c.l.b16 %v694
        %v1059 = vunpack.c.h.b16 %v694
        %v1060 = vunpack.c.l.b16 %v695
        %v1061 = vunpack.c.h.b16 %v695
        %v1062 = vunpack.c.l.b16 %v696
        %v1063 = vunpack.c.h.b16 %v696
        %v1064 = vunpack.c.l.b16 %v697
        %v1065 = vunpack.c.h.b16 %v697
        %v1066 = vpack.c.b16 %v844, %v842
        %v1067 = vpack.c.b16 %v845, %v843
        %v1068 = vpack.c.b16 %v848, %v846
        %v1069 = vpack.c.b16 %v849, %v847
        %v1070 = vpack.c.b16 %v852, %v850
        %v1071 = vpack.c.b16 %v853, %v851
        %v1072 = vpack.c.b16 %v856, %v854
        %v1073 = vpack.c.b16 %v857, %v855
        %v1074 = vpack.c.b16 %v860, %v858
        %v1075 = vpack.c.b16 %v861, %v859
        %v1076 = vpack.c.b16 %v864, %v862
        %v1077 = vpack.c.b16 %v865, %v863
        %v1078 = vpack.c.b16 %v868, %v866
        %v1079 = vpack.c.b16 %v869, %v867
        %v1080 = vpack.c.b16 %v872, %v870
        %v1081 = vpack.c.b16 %v873, %v871
        %v1082 = vpack.c.b16 %v876, %v874
        %v1083 = vpack.c.b16 %v877, %v875
        %v1084 = vpack.c.b16 %v880, %v878
        %v1085 = vpack.c.b16 %v881, %v879
        %v1086 = vpack.c.b16 %v884, %v882
        %v1087 = vpack.c.b16 %v885, %v883
        %v1088 = vpack.c.b16 %v888, %v886
        %v1089 = vpack.c.b16 %v889, %v887
        %v1090 = vpack.c.b16 %v892, %v890
        %v1091 = vpack.c.b16 %v893, %v891
        %v1092 = vpack.c.b16 %v896, %v894
        %v1093 = vpack.c.b16 %v897, %v895
        %v1094 = vpack.c.b16 %v900, %v898
        %v1095 = vpack.c.b16 %v901, %v899
        %v1096 = vpack.c.b16 %v904, %v902
        %v1097 = vpack.c.b16 %v905, %v903
        %v1098 = vpack.c.b16 %v908, %v906
        %v1099 = vpack.c.b16 %v909, %v907
        %v1100 = vpack.c.b16 %v912, %v910
        %v1101 = vpack.c.b16 %v913, %v911
        %v1102 = vpack.c.b16 %v916, %v914
        %v1103 = vpack.c.b16 %v917, %v915
        %v1104 = vpack.c.b16 %v920, %v918
        %v1105 = vpack.c.b16 %v921, %v919
        %v1106 = vpack.c.b16 %v924, %v922
        %v1107 = vpack.c.b16 %v925, %v923
        %v1108 = vpack.c.b16 %v928, %v926
        %v1109 = vpack.c.b16 %v929, %v927
        %v1110 = vpack.c.b16 %v932, %v930
        %v1111 = vpack.c.b16 %v933, %v931
        %v1112 = vpack.c.b16 %v936, %v934
        %v1113 = vpack.c.b16 %v937, %v935
        %v1114 = vpack.c.b16 %v940, %v938
        %v1115 = vpack.c.b16 %v941, %v939
        %v1116 = vpack.c.b16 %v944, %v942
        %v1117 = vpack.c.b16 %v945, %v943
        %v1118 = vpack.c.b16 %v948, %v946
        %v1119 = vpack.c.b16 %v949, %v947
        %v1120 = vpack.c.b16 %v952, %v950
        %v1121 = vpack.c.b16 %v953, %v951
        %v1122 = vpack.c.b16 %v956, %v954
        %v1123 = vpack.c.b16 %v957, %v955
        %v1124 = vpack.c.b16 %v960, %v958
        %v1125 = vpack.c.b16 %v961, %v959
        %v1126 = vpack.c.b16 %v964, %v962
        %v1127 = vpack.c.b16 %v965, %v963
        %v1128 = vpack.c.b16 %v968, %v966
        %v1129 = vpack.c.b16 %v969, %v967
        %v1130 = vpack.c.b16 %v972, %v970
        %v1131 = vpack.c.b16 %v973, %v971
        %v1132 = vpack.c.b16 %v976, %v974
        %v1133 = vpack.c.b16 %v977, %v975
        %v1134 = vpack.c.b16 %v980, %v978
        %v1135 = vpack.c.b16 %v981, %v979
        %v1136 = vpack.c.b16 %v984, %v982
        %v1137 = vpack.c.b16 %v985, %v983
        %v1138 = vpack.c.b16 %v988, %v986
        %v1139 = vpack.c.b16 %v989, %v987
        %v1140 = vpack.c.b16 %v992, %v990
        %v1141 = vpack.c.b16 %v993, %v991
        %v1142 = vpack.c.b16 %v996, %v994
        %v1143 = vpack.c.b16 %v997, %v995
        %v1144 = vpack.c.b16 %v1000, %v998
        %v1145 = vpack.c.b16 %v1001, %v999
        %v1146 = vpack.c.b16 %v1004, %v1002
        %v1147 = vpack.c.b16 %v1005, %v1003
        %v1148 = vpack.c.b16 %v1008, %v1006
        %v1149 = vpack.c.b16 %v1009, %v1007
        %v1150 = vpack.c.b16 %v1012, %v1010
        %v1151 = vpack.c.b16 %v1013, %v1011
        %v1152 = vpack.c.b16 %v1016, %v1014
        %v1153 = vpack.c.b16 %v1017, %v1015
        %v1154 = vpack.c.b16 %v1020, %v1018
        %v1155 = vpack.c.b16 %v1021, %v1019
        %v1156 = vpack.c.b16 %v1024, %v1022
        %v1157 = vpack.c.b16 %v1025, %v1023
        %v1158 = vpack.c.b16 %v1028, %v1026
        %v1159 = vpack.c.b16 %v1029, %v1027
        %v1160 = vpack.c.b16 %v1032, %v1030
        %v1161 = vpack.c.b16 %v1033, %v1031
        %v1162 = vpack.c.b16 %v1036, %v1034
        %v1163 = vpack.c.b16 %v1037, %v1035
        %v1164 = vpack.c.b16 %v1040, %v1038
        %v1165 = vpack.c.b16 %v1041, %v1039
        %v1166 = vpack.c.b16 %v1044, %v1042
        %v1167 = vpack.c.b16 %v1045, %v1043
        %v1168 = vpack.c.b16 %v1048, %v1046
        %v1169 = vpack.c.b16 %v1049, %v1047
        %v1170 = vpack.c.b16 %v1052, %v1050
        %v1171 = vpack.c.b16 %v1053, %v1051
        %v1172 = vpack.c.b16 %v1056, %v1054
        %v1173 = vpack.c.b16 %v1057, %v1055
        %v1174 = vpack.c.b16 %v1060, %v1058
        %v1175 = vpack.c.b16 %v1061, %v1059
        %v1176 = vpack.c.b16 %v1064, %v1062
        %v1177 = vpack.c.b16 %v1065, %v1063
        %v1322 = vunpack.c.l.b16 %v698
        %v1323 = vunpack.c.l.b16 %v699
        %v1324 = vunpack.c.l.b16 %v700
        %v1325 = vunpack.c.l.b16 %v701
        %v1326 = vunpack.c.l.b16 %v702
        %v1327 = vunpack.c.l.b16 %v703
        %v1328 = vunpack.c.l.b16 %v704
        %v1329 = vunpack.c.l.b16 %v705
        %v1330 = vunpack.c.l.b16 %v706
        %v1331 = vunpack.c.l.b16 %v707
        %v1332 = vunpack.c.l.b16 %v708
        %v1333 = vunpack.c.l.b16 %v709
        %v1334 = vunpack.c.l.b16 %v710
        %v1335 = vunpack.c.l.b16 %v711
        %v1336 = vunpack.c.l.b16 %v712
        %v1337 = vunpack.c.l.b16 %v713
        %v1338 = vunpack.c.l.b16 %v714
        %v1339 = vunpack.c.l.b16 %v715
        %v1340 = vunpack.c.l.b16 %v716
        %v1341 = vunpack.c.l.b16 %v717
        %v1342 = vunpack.c.l.b16 %v718
        %v1343 = vunpack.c.l.b16 %v719
        %v1344 = vunpack.c.l.b16 %v720
        %v1345 = vunpack.c.l.b16 %v721
        %v1346 = vunpack.c.l.b16 %v722
        %v1347 = vunpack.c.l.b16 %v723
        %v1348 = vunpack.c.l.b16 %v724
        %v1349 = vunpack.c.l.b16 %v725
        %v1350 = vunpack.c.l.b16 %v726
        %v1351 = vunpack.c.l.b16 %v727
        %v1352 = vunpack.c.l.b16 %v728
        %v1353 = vunpack.c.l.b16 %v729
        %v1354 = vpack.c.b16 %v1323, %v1322
        %v1355 = vpack.c.b16 %v1325, %v1324
        %v1356 = vpack.c.b16 %v1327, %v1326
        %v1357 = vpack.c.b16 %v1329, %v1328
        %v1358 = vpack.c.b16 %v1331, %v1330
        %v1359 = vpack.c.b16 %v1333, %v1332
        %v1360 = vpack.c.b16 %v1335, %v1334
        %v1361 = vpack.c.b16 %v1337, %v1336
        %v1362 = vpack.c.b16 %v1339, %v1338
        %v1363 = vpack.c.b16 %v1341, %v1340
        %v1364 = vpack.c.b16 %v1343, %v1342
        %v1365 = vpack.c.b16 %v1345, %v1344
        %v1366 = vpack.c.b16 %v1347, %v1346
        %v1367 = vpack.c.b16 %v1349, %v1348
        %v1368 = vpack.c.b16 %v1351, %v1350
        %v1369 = vpack.c.b16 %v1353, %v1352
        %1386 = vmatprep.subr.bf16.mxu0 0
        %1387 = vmatpush1.bf16.msra.mxu0 %v1361
        %1388 = vmatprep.subr.bf16.mxu0 0
        %1389 = vmatpush1.bf16.msra.mxu0 %v1360
        %1390 = vmatprep.subr.bf16.mxu0 0
        %1391 = vmatpush1.bf16.msra.mxu0 %v1359
        %1392 = vmatprep.subr.bf16.mxu0 0
        %1393 = vmatpush1.bf16.msra.mxu0 %v1358
        %1394 = vmatprep.subr.bf16.mxu0 0
        %1395 = vmatpush1.bf16.msra.mxu0 %v1357
        %1396 = vmatprep.subr.bf16.mxu0 0
        %1397 = vmatpush1.bf16.msra.mxu0 %v1356
        %1398 = vmatprep.subr.bf16.mxu0 0
        %1399 = vmatpush1.bf16.msra.mxu0 %v1355
        %1400 = vmatprep.subr.bf16.mxu0 0
        %1401 = vmatpush1.bf16.msra.mxu0 %v1354
        %1402 = vmatprep.subr.bf16.mxu0 0
        %1403 = vmatpush2.bf16.msra.mxu0 %v1369
        %1404 = vmatprep.subr.bf16.mxu0 0
        %1405 = vmatpush2.bf16.msra.mxu0 %v1368
        %1406 = vmatprep.subr.bf16.mxu0 0
        %1407 = vmatpush2.bf16.msra.mxu0 %v1367
        %1408 = vmatprep.subr.bf16.mxu0 0
        %1409 = vmatpush2.bf16.msra.mxu0 %v1366
        %1410 = vmatprep.subr.bf16.mxu0 0
        %1411 = vmatpush2.bf16.msra.mxu0 %v1365
        %1412 = vmatprep.subr.bf16.mxu0 0
        %1413 = vmatpush2.bf16.msra.mxu0 %v1364
        %1414 = vmatprep.subr.bf16.mxu0 0
        %1415 = vmatpush2.bf16.msra.mxu0 %v1363
        %1416 = vmatprep.subr.bf16.mxu0 0
        %1417 = vmatpush2.bf16.msra.mxu0 %v1362
        %1418 = vmatprep.mubr.bf16.mxu0 %v1067
        %1419 = vmatmul.mubr.bf16.gmra.mxu0 %v1066
        %v1420 = vpop.f32.mrf.mxu0
        %v1421 = vadd.f32 0.0, %v1420
        %v1422 = vpop.f32.mrf.mxu0
        %v1423 = vpop.f32.mrf.mxu0
        %v1424 = vadd.f32 0.0, %v1423
        %v1425 = vpop.f32.mrf.mxu0
        %1426 = vmatprep.mubr.bf16.mxu0 %v1069
        %1427 = vmatmul.mubr.bf16.gmra.mxu0 %v1068
        %v1428 = vpop.f32.mrf.mxu0
        %v1429 = vadd.f32 0.0, %v1428
        %v1430 = vpop.f32.mrf.mxu0
        %v1431 = vpop.f32.mrf.mxu0
        %v1432 = vadd.f32 0.0, %v1431
        %v1433 = vpop.f32.mrf.mxu0
        %1434 = vmatprep.mubr.bf16.mxu0 %v1071
        %1435 = vmatmul.mubr.bf16.gmra.mxu0 %v1070
        %v1436 = vpop.f32.mrf.mxu0
        %v1437 = vadd.f32 0.0, %v1436
        %v1438 = vpop.f32.mrf.mxu0
        %v1439 = vpop.f32.mrf.mxu0
        %v1440 = vadd.f32 0.0, %v1439
        %v1441 = vpop.f32.mrf.mxu0
        %1442 = vmatprep.mubr.bf16.mxu0 %v1073
        %1443 = vmatmul.mubr.bf16.gmra.mxu0 %v1072
        %v1444 = vpop.f32.mrf.mxu0
        %v1445 = vadd.f32 0.0, %v1444
        %v1446 = vpop.f32.mrf.mxu0
        %v1447 = vpop.f32.mrf.mxu0
        %v1448 = vadd.f32 0.0, %v1447
        %v1449 = vpop.f32.mrf.mxu0
        %1450 = vmatprep.mubr.bf16.mxu0 %v1075
        %1451 = vmatmul.mubr.bf16.gmra.mxu0 %v1074
        %v1452 = vpop.f32.mrf.mxu0
        %v1453 = vadd.f32 0.0, %v1452
        %v1454 = vpop.f32.mrf.mxu0
        %v1455 = vpop.f32.mrf.mxu0
        %v1456 = vadd.f32 0.0, %v1455
        %v1457 = vpop.f32.mrf.mxu0
        %1458 = vmatprep.mubr.bf16.mxu0 %v1077
        %1459 = vmatmul.mubr.bf16.gmra.mxu0 %v1076
        %v1460 = vpop.f32.mrf.mxu0
        %v1461 = vadd.f32 0.0, %v1460
        %v1462 = vpop.f32.mrf.mxu0
        %v1463 = vpop.f32.mrf.mxu0
        %v1464 = vadd.f32 0.0, %v1463
        %v1465 = vpop.f32.mrf.mxu0
        %1466 = vmatprep.mubr.bf16.mxu0 %v1079
        %1467 = vmatmul.mubr.bf16.gmra.mxu0 %v1078
        %v1468 = vpop.f32.mrf.mxu0
        %v1469 = vadd.f32 0.0, %v1468
        %v1470 = vpop.f32.mrf.mxu0
        %v1471 = vpop.f32.mrf.mxu0
        %v1472 = vadd.f32 0.0, %v1471
        %v1473 = vpop.f32.mrf.mxu0
        %1474 = vmatprep.mubr.bf16.mxu0 %v1081
        %1475 = vmatmul.mubr.bf16.gmra.mxu0 %v1080
        %v1476 = vpop.f32.mrf.mxu0
        %v1477 = vadd.f32 0.0, %v1476
        %v1478 = vpop.f32.mrf.mxu0
        %v1479 = vpop.f32.mrf.mxu0
        %v1480 = vadd.f32 0.0, %v1479
        %v1481 = vpop.f32.mrf.mxu0
        %1482 = vmatprep.mubr.bf16.mxu0 %v1083
        %1483 = vmatmul.mubr.bf16.gmra.mxu0 %v1082
        %v1484 = vpop.f32.mrf.mxu0
        %v1485 = vadd.f32 0.0, %v1484
        %v1486 = vpop.f32.mrf.mxu0
        %v1487 = vpop.f32.mrf.mxu0
        %v1488 = vadd.f32 0.0, %v1487
        %v1489 = vpop.f32.mrf.mxu0
        %1490 = vmatprep.mubr.bf16.mxu0 %v1085
        %1491 = vmatmul.mubr.bf16.gmra.mxu0 %v1084
        %v1492 = vpop.f32.mrf.mxu0
        %v1493 = vadd.f32 0.0, %v1492
        %v1494 = vpop.f32.mrf.mxu0
        %v1495 = vpop.f32.mrf.mxu0
        %v1496 = vadd.f32 0.0, %v1495
        %v1497 = vpop.f32.mrf.mxu0
        %1498 = vmatprep.mubr.bf16.mxu0 %v1087
        %1499 = vmatmul.mubr.bf16.gmra.mxu0 %v1086
        %v1500 = vpop.f32.mrf.mxu0
        %v1501 = vadd.f32 0.0, %v1500
        %v1502 = vpop.f32.mrf.mxu0
        %v1503 = vpop.f32.mrf.mxu0
        %v1504 = vadd.f32 0.0, %v1503
        %v1505 = vpop.f32.mrf.mxu0
        %1506 = vmatprep.mubr.bf16.mxu0 %v1089
        %1507 = vmatmul.mubr.bf16.gmra.mxu0 %v1088
        %v1508 = vpop.f32.mrf.mxu0
        %v1509 = vadd.f32 0.0, %v1508
        %v1510 = vpop.f32.mrf.mxu0
        %v1511 = vpop.f32.mrf.mxu0
        %v1512 = vadd.f32 0.0, %v1511
        %v1513 = vpop.f32.mrf.mxu0
        %1514 = vmatprep.mubr.bf16.mxu0 %v1091
        %1515 = vmatmul.mubr.bf16.gmra.mxu0 %v1090
        %v1516 = vpop.f32.mrf.mxu0
        %v1517 = vadd.f32 0.0, %v1516
        %v1518 = vpop.f32.mrf.mxu0
        %v1519 = vpop.f32.mrf.mxu0
        %v1520 = vadd.f32 0.0, %v1519
        %v1521 = vpop.f32.mrf.mxu0
        %1522 = vmatprep.mubr.bf16.mxu0 %v1093
        %1523 = vmatmul.mubr.bf16.gmra.mxu0 %v1092
        %v1524 = vpop.f32.mrf.mxu0
        %v1525 = vadd.f32 0.0, %v1524
        %v1526 = vpop.f32.mrf.mxu0
        %v1527 = vpop.f32.mrf.mxu0
        %v1528 = vadd.f32 0.0, %v1527
        %v1529 = vpop.f32.mrf.mxu0
        %1530 = vmatprep.mubr.bf16.mxu0 %v1095
        %1531 = vmatmul.mubr.bf16.gmra.mxu0 %v1094
        %v1532 = vpop.f32.mrf.mxu0
        %v1533 = vadd.f32 0.0, %v1532
        %v1534 = vpop.f32.mrf.mxu0
        %v1535 = vpop.f32.mrf.mxu0
        %v1536 = vadd.f32 0.0, %v1535
        %v1537 = vpop.f32.mrf.mxu0
        %1538 = vmatprep.mubr.bf16.mxu0 %v1097
        %1539 = vmatmul.mubr.bf16.gmra.mxu0 %v1096
        %v1540 = vpop.f32.mrf.mxu0
        %v1541 = vadd.f32 0.0, %v1540
        %v1542 = vpop.f32.mrf.mxu0
        %v1543 = vpop.f32.mrf.mxu0
        %v1544 = vadd.f32 0.0, %v1543
        %v1545 = vpop.f32.mrf.mxu0
        %1546 = vmatprep.mubr.bf16.mxu0 %v1099
        %1547 = vmatmul.mubr.bf16.gmra.mxu0 %v1098
        %v1548 = vpop.f32.mrf.mxu0
        %v1549 = vadd.f32 0.0, %v1548
        %v1550 = vpop.f32.mrf.mxu0
        %v1551 = vpop.f32.mrf.mxu0
        %v1552 = vadd.f32 0.0, %v1551
        %v1553 = vpop.f32.mrf.mxu0
        %1554 = vmatprep.mubr.bf16.mxu0 %v1101
        %1555 = vmatmul.mubr.bf16.gmra.mxu0 %v1100
        %v1556 = vpop.f32.mrf.mxu0
        %v1557 = vadd.f32 0.0, %v1556
        %v1558 = vpop.f32.mrf.mxu0
        %v1559 = vpop.f32.mrf.mxu0
        %v1560 = vadd.f32 0.0, %v1559
        %v1561 = vpop.f32.mrf.mxu0
        %1562 = vmatprep.mubr.bf16.mxu0 %v1103
        %1563 = vmatmul.mubr.bf16.gmra.mxu0 %v1102
        %v1564 = vpop.f32.mrf.mxu0
        %v1565 = vadd.f32 0.0, %v1564
        %v1566 = vpop.f32.mrf.mxu0
        %v1567 = vpop.f32.mrf.mxu0
        %v1568 = vadd.f32 0.0, %v1567
        %v1569 = vpop.f32.mrf.mxu0
        %1570 = vmatprep.mubr.bf16.mxu0 %v1105
        %1571 = vmatmul.mubr.bf16.gmra.mxu0 %v1104
        %v1572 = vpop.f32.mrf.mxu0
        %v1573 = vadd.f32 0.0, %v1572
        %v1574 = vpop.f32.mrf.mxu0
        %v1575 = vpop.f32.mrf.mxu0
        %v1576 = vadd.f32 0.0, %v1575
        %v1577 = vpop.f32.mrf.mxu0
        %1578 = vmatprep.mubr.bf16.mxu0 %v1107
        %1579 = vmatmul.mubr.bf16.gmra.mxu0 %v1106
        %v1580 = vpop.f32.mrf.mxu0
        %v1581 = vadd.f32 0.0, %v1580
        %v1582 = vpop.f32.mrf.mxu0
        %v1583 = vpop.f32.mrf.mxu0
        %v1584 = vadd.f32 0.0, %v1583
        %v1585 = vpop.f32.mrf.mxu0
        %1586 = vmatprep.mubr.bf16.mxu0 %v1109
        %1587 = vmatmul.mubr.bf16.gmra.mxu0 %v1108
        %v1588 = vpop.f32.mrf.mxu0
        %v1589 = vadd.f32 0.0, %v1588
        %v1590 = vpop.f32.mrf.mxu0
        %v1591 = vpop.f32.mrf.mxu0
        %v1592 = vadd.f32 0.0, %v1591
        %v1593 = vpop.f32.mrf.mxu0
        %1594 = vmatprep.mubr.bf16.mxu0 %v1111
        %1595 = vmatmul.mubr.bf16.gmra.mxu0 %v1110
        %v1596 = vpop.f32.mrf.mxu0
        %v1597 = vadd.f32 0.0, %v1596
        %v1598 = vpop.f32.mrf.mxu0
        %v1599 = vpop.f32.mrf.mxu0
        %v1600 = vadd.f32 0.0, %v1599
        %v1601 = vpop.f32.mrf.mxu0
        %1602 = vmatprep.mubr.bf16.mxu0 %v1113
        %1603 = vmatmul.mubr.bf16.gmra.mxu0 %v1112
        %v1604 = vpop.f32.mrf.mxu0
        %v1605 = vadd.f32 0.0, %v1604
        %v1606 = vpop.f32.mrf.mxu0
        %v1607 = vpop.f32.mrf.mxu0
        %v1608 = vadd.f32 0.0, %v1607
        %v1609 = vpop.f32.mrf.mxu0
        %1610 = vmatprep.mubr.bf16.mxu0 %v1115
        %1611 = vmatmul.mubr.bf16.gmra.mxu0 %v1114
        %v1612 = vpop.f32.mrf.mxu0
        %v1613 = vadd.f32 0.0, %v1612
        %v1614 = vpop.f32.mrf.mxu0
        %v1615 = vpop.f32.mrf.mxu0
        %v1616 = vadd.f32 0.0, %v1615
        %v1617 = vpop.f32.mrf.mxu0
        %1618 = vmatprep.mubr.bf16.mxu0 %v1117
        %1619 = vmatmul.mubr.bf16.gmra.mxu0 %v1116
        %v1620 = vpop.f32.mrf.mxu0
        %v1621 = vadd.f32 0.0, %v1620
        %v1622 = vpop.f32.mrf.mxu0
        %v1623 = vpop.f32.mrf.mxu0
        %v1624 = vadd.f32 0.0, %v1623
        %v1625 = vpop.f32.mrf.mxu0
        %1626 = vmatprep.mubr.bf16.mxu0 %v1119
        %1627 = vmatmul.mubr.bf16.gmra.mxu0 %v1118
        %v1628 = vpop.f32.mrf.mxu0
        %v1629 = vadd.f32 0.0, %v1628
        %v1630 = vpop.f32.mrf.mxu0
        %v1631 = vpop.f32.mrf.mxu0
        %v1632 = vadd.f32 0.0, %v1631
        %v1633 = vpop.f32.mrf.mxu0
        %1634 = vmatprep.mubr.bf16.mxu0 %v1121
        %1635 = vmatmul.mubr.bf16.gmra.mxu0 %v1120
        %v1636 = vpop.f32.mrf.mxu0
        %v1637 = vadd.f32 0.0, %v1636
        %v1638 = vpop.f32.mrf.mxu0
        %v1639 = vpop.f32.mrf.mxu0
        %v1640 = vadd.f32 0.0, %v1639
        %v1641 = vpop.f32.mrf.mxu0
        %1642 = vmatprep.mubr.bf16.mxu0 %v1123
        %1643 = vmatmul.mubr.bf16.gmra.mxu0 %v1122
        %v1644 = vpop.f32.mrf.mxu0
        %v1645 = vadd.f32 0.0, %v1644
        %v1646 = vpop.f32.mrf.mxu0
        %v1647 = vpop.f32.mrf.mxu0
        %v1648 = vadd.f32 0.0, %v1647
        %v1649 = vpop.f32.mrf.mxu0
        %1650 = vmatprep.mubr.bf16.mxu0 %v1125
        %1651 = vmatmul.mubr.bf16.gmra.mxu0 %v1124
        %v1652 = vpop.f32.mrf.mxu0
        %v1653 = vadd.f32 0.0, %v1652
        %v1654 = vpop.f32.mrf.mxu0
        %v1655 = vpop.f32.mrf.mxu0
        %v1656 = vadd.f32 0.0, %v1655
        %v1657 = vpop.f32.mrf.mxu0
        %1658 = vmatprep.mubr.bf16.mxu0 %v1127
        %1659 = vmatmul.mubr.bf16.gmra.mxu0 %v1126
        %v1660 = vpop.f32.mrf.mxu0
        %v1661 = vadd.f32 0.0, %v1660
        %v1662 = vpop.f32.mrf.mxu0
        %v1663 = vpop.f32.mrf.mxu0
        %v1664 = vadd.f32 0.0, %v1663
        %v1665 = vpop.f32.mrf.mxu0
        %1666 = vmatprep.mubr.bf16.mxu0 %v1129
        %1667 = vmatmul.mubr.bf16.gmra.mxu0 %v1128
        %v1668 = vpop.f32.mrf.mxu0
        %v1669 = vadd.f32 0.0, %v1668
        %v1670 = vpop.f32.mrf.mxu0
        %v1671 = vpop.f32.mrf.mxu0
        %v1672 = vadd.f32 0.0, %v1671
        %v1673 = vpop.f32.mrf.mxu0
        %1674 = vmatprep.mubr.bf16.mxu0 %v1131
        %1675 = vmatmul.mubr.bf16.gmra.mxu0 %v1130
        %v1676 = vpop.f32.mrf.mxu0
        %v1677 = vadd.f32 0.0, %v1676
        %v1678 = vpop.f32.mrf.mxu0
        %v1679 = vpop.f32.mrf.mxu0
        %v1680 = vadd.f32 0.0, %v1679
        %v1681 = vpop.f32.mrf.mxu0
        %1682 = vmatprep.mubr.bf16.mxu0 %v1133
        %1683 = vmatmul.mubr.bf16.gmra.mxu0 %v1132
        %v1684 = vpop.f32.mrf.mxu0
        %v1685 = vadd.f32 0.0, %v1684
        %v1686 = vpop.f32.mrf.mxu0
        %v1687 = vpop.f32.mrf.mxu0
        %v1688 = vadd.f32 0.0, %v1687
        %v1689 = vpop.f32.mrf.mxu0
        %1690 = vmatprep.mubr.bf16.mxu0 %v1135
        %1691 = vmatmul.mubr.bf16.gmra.mxu0 %v1134
        %v1692 = vpop.f32.mrf.mxu0
        %v1693 = vadd.f32 0.0, %v1692
        %v1694 = vpop.f32.mrf.mxu0
        %v1695 = vpop.f32.mrf.mxu0
        %v1696 = vadd.f32 0.0, %v1695
        %v1697 = vpop.f32.mrf.mxu0
        %1698 = vmatprep.mubr.bf16.mxu0 %v1137
        %1699 = vmatmul.mubr.bf16.gmra.mxu0 %v1136
        %v1700 = vpop.f32.mrf.mxu0
        %v1701 = vadd.f32 0.0, %v1700
        %v1702 = vpop.f32.mrf.mxu0
        %v1703 = vpop.f32.mrf.mxu0
        %v1704 = vadd.f32 0.0, %v1703
        %v1705 = vpop.f32.mrf.mxu0
        %1706 = vmatprep.mubr.bf16.mxu0 %v1139
        %1707 = vmatmul.mubr.bf16.gmra.mxu0 %v1138
        %v1708 = vpop.f32.mrf.mxu0
        %v1709 = vadd.f32 0.0, %v1708
        %v1710 = vpop.f32.mrf.mxu0
        %v1711 = vpop.f32.mrf.mxu0
        %v1712 = vadd.f32 0.0, %v1711
        %v1713 = vpop.f32.mrf.mxu0
        %1714 = vmatprep.mubr.bf16.mxu0 %v1141
        %1715 = vmatmul.mubr.bf16.gmra.mxu0 %v1140
        %v1716 = vpop.f32.mrf.mxu0
        %v1717 = vadd.f32 0.0, %v1716
        %v1718 = vpop.f32.mrf.mxu0
        %v1719 = vpop.f32.mrf.mxu0
        %v1720 = vadd.f32 0.0, %v1719
        %v1721 = vpop.f32.mrf.mxu0
        %1722 = vmatprep.mubr.bf16.mxu0 %v1143
        %1723 = vmatmul.mubr.bf16.gmra.mxu0 %v1142
        %v1724 = vpop.f32.mrf.mxu0
        %v1725 = vadd.f32 0.0, %v1724
        %v1726 = vpop.f32.mrf.mxu0
        %v1727 = vpop.f32.mrf.mxu0
        %v1728 = vadd.f32 0.0, %v1727
        %v1729 = vpop.f32.mrf.mxu0
        %1730 = vmatprep.mubr.bf16.mxu0 %v1145
        %1731 = vmatmul.mubr.bf16.gmra.mxu0 %v1144
        %v1732 = vpop.f32.mrf.mxu0
        %v1733 = vadd.f32 0.0, %v1732
        %v1734 = vpop.f32.mrf.mxu0
        %v1735 = vpop.f32.mrf.mxu0
        %v1736 = vadd.f32 0.0, %v1735
        %v1737 = vpop.f32.mrf.mxu0
        %1738 = vmatprep.mubr.bf16.mxu0 %v1147
        %1739 = vmatmul.mubr.bf16.gmra.mxu0 %v1146
        %v1740 = vpop.f32.mrf.mxu0
        %v1741 = vadd.f32 0.0, %v1740
        %v1742 = vpop.f32.mrf.mxu0
        %v1743 = vpop.f32.mrf.mxu0
        %v1744 = vadd.f32 0.0, %v1743
        %v1745 = vpop.f32.mrf.mxu0
        %1746 = vmatprep.mubr.bf16.mxu0 %v1149
        %1747 = vmatmul.mubr.bf16.gmra.mxu0 %v1148
        %v1748 = vpop.f32.mrf.mxu0
        %v1749 = vadd.f32 0.0, %v1748
        %v1750 = vpop.f32.mrf.mxu0
        %v1751 = vpop.f32.mrf.mxu0
        %v1752 = vadd.f32 0.0, %v1751
        %v1753 = vpop.f32.mrf.mxu0
        %1754 = vmatprep.mubr.bf16.mxu0 %v1151
        %1755 = vmatmul.mubr.bf16.gmra.mxu0 %v1150
        %v1756 = vpop.f32.mrf.mxu0
        %v1757 = vadd.f32 0.0, %v1756
        %v1758 = vpop.f32.mrf.mxu0
        %v1759 = vpop.f32.mrf.mxu0
        %v1760 = vadd.f32 0.0, %v1759
        %v1761 = vpop.f32.mrf.mxu0
        %1762 = vmatprep.mubr.bf16.mxu0 %v1153
        %1763 = vmatmul.mubr.bf16.gmra.mxu0 %v1152
        %v1764 = vpop.f32.mrf.mxu0
        %v1765 = vadd.f32 0.0, %v1764
        %v1766 = vpop.f32.mrf.mxu0
        %v1767 = vpop.f32.mrf.mxu0
        %v1768 = vadd.f32 0.0, %v1767
        %v1769 = vpop.f32.mrf.mxu0
        %1770 = vmatprep.mubr.bf16.mxu0 %v1155
        %1771 = vmatmul.mubr.bf16.gmra.mxu0 %v1154
        %v1772 = vpop.f32.mrf.mxu0
        %v1773 = vadd.f32 0.0, %v1772
        %v1774 = vpop.f32.mrf.mxu0
        %v1775 = vpop.f32.mrf.mxu0
        %v1776 = vadd.f32 0.0, %v1775
        %v1777 = vpop.f32.mrf.mxu0
        %1778 = vmatprep.mubr.bf16.mxu0 %v1157
        %1779 = vmatmul.mubr.bf16.gmra.mxu0 %v1156
        %v1780 = vpop.f32.mrf.mxu0
        %v1781 = vadd.f32 0.0, %v1780
        %v1782 = vpop.f32.mrf.mxu0
        %v1783 = vpop.f32.mrf.mxu0
        %v1784 = vadd.f32 0.0, %v1783
        %v1785 = vpop.f32.mrf.mxu0
        %1786 = vmatprep.mubr.bf16.mxu0 %v1159
        %1787 = vmatmul.mubr.bf16.gmra.mxu0 %v1158
        %v1788 = vpop.f32.mrf.mxu0
        %v1789 = vadd.f32 0.0, %v1788
        %v1790 = vpop.f32.mrf.mxu0
        %v1791 = vpop.f32.mrf.mxu0
        %v1792 = vadd.f32 0.0, %v1791
        %v1793 = vpop.f32.mrf.mxu0
        %1794 = vmatprep.mubr.bf16.mxu0 %v1161
        %1795 = vmatmul.mubr.bf16.gmra.mxu0 %v1160
        %v1796 = vpop.f32.mrf.mxu0
        %v1797 = vadd.f32 0.0, %v1796
        %v1798 = vpop.f32.mrf.mxu0
        %v1799 = vpop.f32.mrf.mxu0
        %v1800 = vadd.f32 0.0, %v1799
        %v1801 = vpop.f32.mrf.mxu0
        %1802 = vmatprep.mubr.bf16.mxu0 %v1163
        %1803 = vmatmul.mubr.bf16.gmra.mxu0 %v1162
        %v1804 = vpop.f32.mrf.mxu0
        %v1805 = vadd.f32 0.0, %v1804
        %v1806 = vpop.f32.mrf.mxu0
        %v1807 = vpop.f32.mrf.mxu0
        %v1808 = vadd.f32 0.0, %v1807
        %v1809 = vpop.f32.mrf.mxu0
        %1810 = vmatprep.mubr.bf16.mxu0 %v1165
        %1811 = vmatmul.mubr.bf16.gmra.mxu0 %v1164
        %v1812 = vpop.f32.mrf.mxu0
        %v1813 = vadd.f32 0.0, %v1812
        %v1814 = vpop.f32.mrf.mxu0
        %v1815 = vpop.f32.mrf.mxu0
        %v1816 = vadd.f32 0.0, %v1815
        %v1817 = vpop.f32.mrf.mxu0
        %1818 = vmatprep.mubr.bf16.mxu0 %v1167
        %1819 = vmatmul.mubr.bf16.gmra.mxu0 %v1166
        %v1820 = vpop.f32.mrf.mxu0
        %v1821 = vadd.f32 0.0, %v1820
        %v1822 = vpop.f32.mrf.mxu0
        %v1823 = vpop.f32.mrf.mxu0
        %v1824 = vadd.f32 0.0, %v1823
        %v1825 = vpop.f32.mrf.mxu0
        %1826 = vmatprep.mubr.bf16.mxu0 %v1169
        %1827 = vmatmul.mubr.bf16.gmra.mxu0 %v1168
        %v1828 = vpop.f32.mrf.mxu0
        %v1829 = vadd.f32 0.0, %v1828
        %v1830 = vpop.f32.mrf.mxu0
        %v1831 = vpop.f32.mrf.mxu0
        %v1832 = vadd.f32 0.0, %v1831
        %v1833 = vpop.f32.mrf.mxu0
        %1834 = vmatprep.mubr.bf16.mxu0 %v1171
        %1835 = vmatmul.mubr.bf16.gmra.mxu0 %v1170
        %v1836 = vpop.f32.mrf.mxu0
        %v1837 = vadd.f32 0.0, %v1836
        %v1838 = vpop.f32.mrf.mxu0
        %v1839 = vpop.f32.mrf.mxu0
        %v1840 = vadd.f32 0.0, %v1839
        %v1841 = vpop.f32.mrf.mxu0
        %1842 = vmatprep.mubr.bf16.mxu0 %v1173
        %1843 = vmatmul.mubr.bf16.gmra.mxu0 %v1172
        %v1844 = vpop.f32.mrf.mxu0
        %v1845 = vadd.f32 0.0, %v1844
        %v1846 = vpop.f32.mrf.mxu0
        %v1847 = vpop.f32.mrf.mxu0
        %v1848 = vadd.f32 0.0, %v1847
        %v1849 = vpop.f32.mrf.mxu0
        %1850 = vmatprep.mubr.bf16.mxu0 %v1175
        %1851 = vmatmul.mubr.bf16.gmra.mxu0 %v1174
        %v1852 = vpop.f32.mrf.mxu0
        %v1853 = vadd.f32 0.0, %v1852
        %v1854 = vpop.f32.mrf.mxu0
        %v1855 = vpop.f32.mrf.mxu0
        %v1856 = vadd.f32 0.0, %v1855
        %v1857 = vpop.f32.mrf.mxu0
        %1858 = vmatprep.mubr.bf16.mxu0 %v1177
        %1859 = vmatmul.mubr.bf16.gmra.mxu0 %v1176
        %v1860 = vpop.f32.mrf.mxu0
        %v1861 = vadd.f32 0.0, %v1860
        %v1862 = vpop.f32.mrf.mxu0
        %v1863 = vpop.f32.mrf.mxu0
        %v1864 = vadd.f32 0.0, %v1863
        %v1865 = vpop.f32.mrf.mxu0
        %1866 = vdwg.mxu0
        %v1867 = vmax.f32 %v1421, %v1485
        %v1868 = vmax.f32 %v1867, %v1549
        %v1869 = vmax.f32 %v1868, %v1613
        %v1870 = vmax.f32 %v1869, %v1677
        %v1871 = vmax.f32 %v1870, %v1741
        %v1872 = vmax.f32 %v1871, %v1805
        %v1873 = vmax.f32 %v1424, %v1488
        %v1874 = vmax.f32 %v1873, %v1552
        %v1875 = vmax.f32 %v1874, %v1616
        %v1876 = vmax.f32 %v1875, %v1680
        %v1877 = vmax.f32 %v1876, %v1744
        %v1878 = vmax.f32 %v1877, %v1808
        %v1879 = vmax.f32 %v1429, %v1493
        %v1880 = vmax.f32 %v1879, %v1557
        %v1881 = vmax.f32 %v1880, %v1621
        %v1882 = vmax.f32 %v1881, %v1685
        %v1883 = vmax.f32 %v1882, %v1749
        %v1884 = vmax.f32 %v1883, %v1813
        %v1885 = vmax.f32 %v1432, %v1496
        %v1886 = vmax.f32 %v1885, %v1560
        %v1887 = vmax.f32 %v1886, %v1624
        %v1888 = vmax.f32 %v1887, %v1688
        %v1889 = vmax.f32 %v1888, %v1752
        %v1890 = vmax.f32 %v1889, %v1816
        %v1891 = vmax.f32 %v1437, %v1501
        %v1892 = vmax.f32 %v1891, %v1565
        %v1893 = vmax.f32 %v1892, %v1629
        %v1894 = vmax.f32 %v1893, %v1693
        %v1895 = vmax.f32 %v1894, %v1757
        %v1896 = vmax.f32 %v1895, %v1821
        %v1897 = vmax.f32 %v1440, %v1504
        %v1898 = vmax.f32 %v1897, %v1568
        %v1899 = vmax.f32 %v1898, %v1632
        %v1900 = vmax.f32 %v1899, %v1696
        %v1901 = vmax.f32 %v1900, %v1760
        %v1902 = vmax.f32 %v1901, %v1824
        %v1903 = vmax.f32 %v1445, %v1509
        %v1904 = vmax.f32 %v1903, %v1573
        %v1905 = vmax.f32 %v1904, %v1637
        %v1906 = vmax.f32 %v1905, %v1701
        %v1907 = vmax.f32 %v1906, %v1765
        %v1908 = vmax.f32 %v1907, %v1829
        %v1909 = vmax.f32 %v1448, %v1512
        %v1910 = vmax.f32 %v1909, %v1576
        %v1911 = vmax.f32 %v1910, %v1640
        %v1912 = vmax.f32 %v1911, %v1704
        %v1913 = vmax.f32 %v1912, %v1768
        %v1914 = vmax.f32 %v1913, %v1832
        %v1915 = vmax.f32 %v1453, %v1517
        %v1916 = vmax.f32 %v1915, %v1581
        %v1917 = vmax.f32 %v1916, %v1645
        %v1918 = vmax.f32 %v1917, %v1709
        %v1919 = vmax.f32 %v1918, %v1773
        %v1920 = vmax.f32 %v1919, %v1837
        %v1921 = vmax.f32 %v1456, %v1520
        %v1922 = vmax.f32 %v1921, %v1584
        %v1923 = vmax.f32 %v1922, %v1648
        %v1924 = vmax.f32 %v1923, %v1712
        %v1925 = vmax.f32 %v1924, %v1776
        %v1926 = vmax.f32 %v1925, %v1840
        %v1927 = vmax.f32 %v1461, %v1525
        %v1928 = vmax.f32 %v1927, %v1589
        %v1929 = vmax.f32 %v1928, %v1653
        %v1930 = vmax.f32 %v1929, %v1717
        %v1931 = vmax.f32 %v1930, %v1781
        %v1932 = vmax.f32 %v1931, %v1845
        %v1933 = vmax.f32 %v1464, %v1528
        %v1934 = vmax.f32 %v1933, %v1592
        %v1935 = vmax.f32 %v1934, %v1656
        %v1936 = vmax.f32 %v1935, %v1720
        %v1937 = vmax.f32 %v1936, %v1784
        %v1938 = vmax.f32 %v1937, %v1848
        %v1939 = vmax.f32 %v1469, %v1533
        %v1940 = vmax.f32 %v1939, %v1597
        %v1941 = vmax.f32 %v1940, %v1661
        %v1942 = vmax.f32 %v1941, %v1725
        %v1943 = vmax.f32 %v1942, %v1789
        %v1944 = vmax.f32 %v1943, %v1853
        %v1945 = vmax.f32 %v1472, %v1536
        %v1946 = vmax.f32 %v1945, %v1600
        %v1947 = vmax.f32 %v1946, %v1664
        %v1948 = vmax.f32 %v1947, %v1728
        %v1949 = vmax.f32 %v1948, %v1792
        %v1950 = vmax.f32 %v1949, %v1856
        %v1951 = vmax.f32 %v1477, %v1541
        %v1952 = vmax.f32 %v1951, %v1605
        %v1953 = vmax.f32 %v1952, %v1669
        %v1954 = vmax.f32 %v1953, %v1733
        %v1955 = vmax.f32 %v1954, %v1797
        %v1956 = vmax.f32 %v1955, %v1861
        %v1957 = vmax.f32 %v1480, %v1544
        %v1958 = vmax.f32 %v1957, %v1608
        %v1959 = vmax.f32 %v1958, %v1672
        %v1960 = vmax.f32 %v1959, %v1736
        %v1961 = vmax.f32 %v1960, %v1800
        %v1962 = vmax.f32 %v1961, %v1864
        %v1963 = vld [vmem:[%s494] sm:$0xf]
        %v1964 = vld [vmem:[%s494 + $0x4] sm:$0xf]
        %v1965 = vld [vmem:[%s494 + $0x8] sm:$0xf]
        %v1966 = vld [vmem:[%s494 + $0xc] sm:$0xf]
        %v1967 = vld [vmem:[%s494 + $0x10] sm:$0xf]
        %v1968 = vld [vmem:[%s494 + $0x14] sm:$0xf]
        %v1969 = vld [vmem:[%s494 + $0x18] sm:$0xf]
        %v1970 = vld [vmem:[%s494 + $0x1c] sm:$0xf]
        %v1971 = vld [vmem:[%s494 + $0x20] sm:$0xf]
        %v1972 = vld [vmem:[%s494 + $0x24] sm:$0xf]
        %v1973 = vld [vmem:[%s494 + $0x28] sm:$0xf]
        %v1974 = vld [vmem:[%s494 + $0x2c] sm:$0xf]
        %v1975 = vld [vmem:[%s494 + $0x30] sm:$0xf]
        %v1976 = vld [vmem:[%s494 + $0x34] sm:$0xf]
        %v1977 = vld [vmem:[%s494 + $0x38] sm:$0xf]
        %v1978 = vld [vmem:[%s494 + $0x3c] sm:$0xf]
        %v1979 = vld [vmem:[#allocation11] sm:$0xf]
        %v1980 = vld [vmem:[#allocation11 + $0x4] sm:$0xf]
        %v1981 = vld [vmem:[#allocation11 + $0x8] sm:$0xf]
        %v1982 = vld [vmem:[#allocation11 + $0xc] sm:$0xf]
        %v1983 = vld [vmem:[#allocation11 + $0x10] sm:$0xf]
        %v1984 = vld [vmem:[#allocation11 + $0x14] sm:$0xf]
        %v1985 = vld [vmem:[#allocation11 + $0x18] sm:$0xf]
        %v1986 = vld [vmem:[#allocation11 + $0x1c] sm:$0xf]
        %v1987 = vld [vmem:[#allocation11 + $0x20] sm:$0xf]
        %v1988 = vld [vmem:[#allocation11 + $0x24] sm:$0xf]
        %v1989 = vld [vmem:[#allocation11 + $0x28] sm:$0xf]
        %v1990 = vld [vmem:[#allocation11 + $0x2c] sm:$0xf]
        %v1991 = vld [vmem:[#allocation11 + $0x30] sm:$0xf]
        %v1992 = vld [vmem:[#allocation11 + $0x34] sm:$0xf]
        %v1993 = vld [vmem:[#allocation11 + $0x38] sm:$0xf]
        %v1994 = vld [vmem:[#allocation11 + $0x3c] sm:$0xf]
        %v1995 = vpack.c.bf16 %v1878, %v1872
        %v1996 = vpack.c.bf16 %v1890, %v1884
        %v1997 = vpack.c.bf16 %v1902, %v1896
        %v1998 = vpack.c.bf16 %v1914, %v1908
        %v1999 = vpack.c.bf16 %v1926, %v1920
        %v2000 = vpack.c.bf16 %v1938, %v1932
        %v2001 = vpack.c.bf16 %v1950, %v1944
        %v2002 = vpack.c.bf16 %v1962, %v1956
        %v2003 = vld [vmem:[#allocation13] sm:$0xf]
        %v2004 = vld [vmem:[#allocation13 + $0x4] sm:$0xf]
        %v2005 = vld [vmem:[#allocation13 + $0x8] sm:$0xf]
        %v2006 = vld [vmem:[#allocation13 + $0xc] sm:$0xf]
        %v2007 = vld [vmem:[#allocation13 + $0x10] sm:$0xf]
        %v2008 = vld [vmem:[#allocation13 + $0x14] sm:$0xf]
        %v2009 = vld [vmem:[#allocation13 + $0x18] sm:$0xf]
        %v2010 = vld [vmem:[#allocation13 + $0x1c] sm:$0xf]
        %v2011 = vld [vmem:[#allocation13 + $0x20] sm:$0xf]
        %v2012 = vld [vmem:[#allocation13 + $0x24] sm:$0xf]
        %v2013 = vld [vmem:[#allocation13 + $0x28] sm:$0xf]
        %v2014 = vld [vmem:[#allocation13 + $0x2c] sm:$0xf]
        %v2015 = vld [vmem:[#allocation13 + $0x30] sm:$0xf]
        %v2016 = vld [vmem:[#allocation13 + $0x34] sm:$0xf]
        %v2017 = vld [vmem:[#allocation13 + $0x38] sm:$0xf]
        %v2018 = vld [vmem:[#allocation13 + $0x3c] sm:$0xf]
        %v2035 = vunpack.c.l.b16 %v2003
        %v2036 = vunpack.c.l.b16 %v2004
        %v2037 = vunpack.c.l.b16 %v2005
        %v2038 = vunpack.c.l.b16 %v2006
        %v2039 = vunpack.c.l.b16 %v2007
        %v2040 = vunpack.c.l.b16 %v2008
        %v2041 = vunpack.c.l.b16 %v2009
        %v2042 = vunpack.c.l.b16 %v2010
        %v2043 = vunpack.c.l.b16 %v2011
        %v2044 = vunpack.c.l.b16 %v2012
        %v2045 = vunpack.c.l.b16 %v2013
        %v2046 = vunpack.c.l.b16 %v2014
        %v2047 = vunpack.c.l.b16 %v2015
        %v2048 = vunpack.c.l.b16 %v2016
        %v2049 = vunpack.c.l.b16 %v2017
        %v2050 = vunpack.c.l.b16 %v2018
        %v2051 = vpack.c.b16 %v2036, %v2035
        %v2052 = vpack.c.b16 %v2038, %v2037
        %v2053 = vpack.c.b16 %v2040, %v2039
        %v2054 = vpack.c.b16 %v2042, %v2041
        %v2055 = vpack.c.b16 %v2044, %v2043
        %v2056 = vpack.c.b16 %v2046, %v2045
        %v2057 = vpack.c.b16 %v2048, %v2047
        %v2058 = vpack.c.b16 %v2050, %v2049
        %2067 = vmatprep.subr.bf16.mxu0 0
        %2068 = vmatpush1.bf16.msra.mxu0 %v2058
        %2069 = vmatprep.subr.bf16.mxu0 0
        %2070 = vmatpush1.bf16.msra.mxu0 %v2057
        %2071 = vmatprep.subr.bf16.mxu0 0
        %2072 = vmatpush1.bf16.msra.mxu0 %v2056
        %2073 = vmatprep.subr.bf16.mxu0 0
        %2074 = vmatpush1.bf16.msra.mxu0 %v2055
        %2075 = vmatprep.subr.bf16.mxu0 0
        %2076 = vmatpush1.bf16.msra.mxu0 %v2054
        %2077 = vmatprep.subr.bf16.mxu0 0
        %2078 = vmatpush1.bf16.msra.mxu0 %v2053
        %2079 = vmatprep.subr.bf16.mxu0 0
        %2080 = vmatpush1.bf16.msra.mxu0 %v2052
        %2081 = vmatprep.subr.bf16.mxu0 0
        %2082 = vmatpush1.bf16.msra.mxu0 %v2051
        %2083 = vmatprep.subr.bf16.mxu0 0
        %2084 = vmatpush2.bf16.msra.mxu0 0
        %2085 = vmatprep.subr.bf16.mxu0 0
        %2086 = vmatpush2.bf16.msra.mxu0 0
        %2087 = vmatprep.subr.bf16.mxu0 0
        %2088 = vmatpush2.bf16.msra.mxu0 0
        %2089 = vmatprep.subr.bf16.mxu0 0
        %2090 = vmatpush2.bf16.msra.mxu0 0
        %2091 = vmatprep.subr.bf16.mxu0 0
        %2092 = vmatpush2.bf16.msra.mxu0 0
        %2093 = vmatprep.subr.bf16.mxu0 0
        %2094 = vmatpush2.bf16.msra.mxu0 0
        %2095 = vmatprep.subr.bf16.mxu0 0
        %2096 = vmatpush2.bf16.msra.mxu0 0
        %2097 = vmatprep.subr.bf16.mxu0 0
        %2098 = vmatpush2.bf16.msra.mxu0 0
        %2099 = vmatprep.mubr.bf16.mxu0 0
        %2100 = vmatmul.mubr.bf16.gmra.mxu0 %v1995
        %v2101 = vpop.f32.mrf.mxu0
        %v2102 = vadd.f32 0.0, %v2101
        %v2103 = vpop.f32.mrf.mxu0
        %v2104 = vpop.f32.mrf.mxu0
        %v2105 = vadd.f32 0.0, %v2104
        %v2106 = vpop.f32.mrf.mxu0
        %2107 = vmatprep.mubr.bf16.mxu0 0
        %2108 = vmatmul.mubr.bf16.gmra.mxu0 %v1996
        %v2109 = vpop.f32.mrf.mxu0
        %v2110 = vadd.f32 0.0, %v2109
        %v2111 = vpop.f32.mrf.mxu0
        %v2112 = vpop.f32.mrf.mxu0
        %v2113 = vadd.f32 0.0, %v2112
        %v2114 = vpop.f32.mrf.mxu0
        %2115 = vmatprep.mubr.bf16.mxu0 0
        %2116 = vmatmul.mubr.bf16.gmra.mxu0 %v1997
        %v2117 = vpop.f32.mrf.mxu0
        %v2118 = vadd.f32 0.0, %v2117
        %v2119 = vpop.f32.mrf.mxu0
        %v2120 = vpop.f32.mrf.mxu0
        %v2121 = vadd.f32 0.0, %v2120
        %v2122 = vpop.f32.mrf.mxu0
        %2123 = vmatprep.mubr.bf16.mxu0 0
        %2124 = vmatmul.mubr.bf16.gmra.mxu0 %v1998
        %v2125 = vpop.f32.mrf.mxu0
        %v2126 = vadd.f32 0.0, %v2125
        %v2127 = vpop.f32.mrf.mxu0
        %v2128 = vpop.f32.mrf.mxu0
        %v2129 = vadd.f32 0.0, %v2128
        %v2130 = vpop.f32.mrf.mxu0
        %2131 = vmatprep.mubr.bf16.mxu0 0
        %2132 = vmatmul.mubr.bf16.gmra.mxu0 %v1999
        %v2133 = vpop.f32.mrf.mxu0
        %v2134 = vadd.f32 0.0, %v2133
        %v2135 = vpop.f32.mrf.mxu0
        %v2136 = vpop.f32.mrf.mxu0
        %v2137 = vadd.f32 0.0, %v2136
        %v2138 = vpop.f32.mrf.mxu0
        %2139 = vmatprep.mubr.bf16.mxu0 0
        %2140 = vmatmul.mubr.bf16.gmra.mxu0 %v2000
        %v2141 = vpop.f32.mrf.mxu0
        %v2142 = vadd.f32 0.0, %v2141
        %v2143 = vpop.f32.mrf.mxu0
        %v2144 = vpop.f32.mrf.mxu0
        %v2145 = vadd.f32 0.0, %v2144
        %v2146 = vpop.f32.mrf.mxu0
        %2147 = vmatprep.mubr.bf16.mxu0 0
        %2148 = vmatmul.mubr.bf16.gmra.mxu0 %v2001
        %v2149 = vpop.f32.mrf.mxu0
        %v2150 = vadd.f32 0.0, %v2149
        %v2151 = vpop.f32.mrf.mxu0
        %v2152 = vpop.f32.mrf.mxu0
        %v2153 = vadd.f32 0.0, %v2152
        %v2154 = vpop.f32.mrf.mxu0
        %2155 = vmatprep.mubr.bf16.mxu0 0
        %2156 = vmatmul.mubr.bf16.gmra.mxu0 %v2002
        %v2157 = vpop.f32.mrf.mxu0
        %v2158 = vadd.f32 0.0, %v2157
        %v2159 = vpop.f32.mrf.mxu0
        %v2160 = vpop.f32.mrf.mxu0
        %v2161 = vadd.f32 0.0, %v2160
        %v2162 = vpop.f32.mrf.mxu0
        %2163 = vdwg.mxu0
        %v2180 = vunpack.c.l.b16 %v1963
        %v2181 = vunpack.c.l.b16 %v1964
        %v2182 = vunpack.c.l.b16 %v1965
        %v2183 = vunpack.c.l.b16 %v1966
        %v2184 = vunpack.c.l.b16 %v1967
        %v2185 = vunpack.c.l.b16 %v1968
        %v2186 = vunpack.c.l.b16 %v1969
        %v2187 = vunpack.c.l.b16 %v1970
        %v2188 = vunpack.c.l.b16 %v1971
        %v2189 = vunpack.c.l.b16 %v1972
        %v2190 = vunpack.c.l.b16 %v1973
        %v2191 = vunpack.c.l.b16 %v1974
        %v2192 = vunpack.c.l.b16 %v1975
        %v2193 = vunpack.c.l.b16 %v1976
        %v2194 = vunpack.c.l.b16 %v1977
        %v2195 = vunpack.c.l.b16 %v1978
        %v2196 = vpack.c.b16 %v2181, %v2180
        %v2197 = vpack.c.b16 %v2183, %v2182
        %v2198 = vpack.c.b16 %v2185, %v2184
        %v2199 = vpack.c.b16 %v2187, %v2186
        %v2200 = vpack.c.b16 %v2189, %v2188
        %v2201 = vpack.c.b16 %v2191, %v2190
        %v2202 = vpack.c.b16 %v2193, %v2192
        %v2203 = vpack.c.b16 %v2195, %v2194
        %v2228 = vunpack.c.l.b16 %v1979
        %v2229 = vunpack.c.l.b16 %v1980
        %v2230 = vunpack.c.l.b16 %v1981
        %v2231 = vunpack.c.l.b16 %v1982
        %v2232 = vunpack.c.l.b16 %v1983
        %v2233 = vunpack.c.l.b16 %v1984
        %v2234 = vunpack.c.l.b16 %v1985
        %v2235 = vunpack.c.l.b16 %v1986
        %v2236 = vunpack.c.l.b16 %v1987
        %v2237 = vunpack.c.l.b16 %v1988
        %v2238 = vunpack.c.l.b16 %v1989
        %v2239 = vunpack.c.l.b16 %v1990
        %v2240 = vunpack.c.l.b16 %v1991
        %v2241 = vunpack.c.l.b16 %v1992
        %v2242 = vunpack.c.l.b16 %v1993
        %v2243 = vunpack.c.l.b16 %v1994
        %v2244 = vpack.c.b16 %v2229, %v2228
        %v2245 = vpack.c.b16 %v2231, %v2230
        %v2246 = vpack.c.b16 %v2233, %v2232
        %v2247 = vpack.c.b16 %v2235, %v2234
        %v2248 = vpack.c.b16 %v2237, %v2236
        %v2249 = vpack.c.b16 %v2239, %v2238
        %v2250 = vpack.c.b16 %v2241, %v2240
        %v2251 = vpack.c.b16 %v2243, %v2242
        %2260 = vmatprep.subr.bf16.mxu0 0
        %2261 = vmatpush1.bf16.msra.mxu0 %v2251
        %2262 = vmatprep.subr.bf16.mxu0 0
        %2263 = vmatpush1.bf16.msra.mxu0 %v2250
        %2264 = vmatprep.subr.bf16.mxu0 0
        %2265 = vmatpush1.bf16.msra.mxu0 %v2249
        %2266 = vmatprep.subr.bf16.mxu0 0
        %2267 = vmatpush1.bf16.msra.mxu0 %v2248
        %2268 = vmatprep.subr.bf16.mxu0 0
        %2269 = vmatpush1.bf16.msra.mxu0 %v2247
        %2270 = vmatprep.subr.bf16.mxu0 0
        %2271 = vmatpush1.bf16.msra.mxu0 %v2246
        %2272 = vmatprep.subr.bf16.mxu0 0
        %2273 = vmatpush1.bf16.msra.mxu0 %v2245
        %2274 = vmatprep.subr.bf16.mxu0 0
        %2275 = vmatpush1.bf16.msra.mxu0 %v2244
        %2276 = vmatprep.subr.bf16.mxu0 0
        %2277 = vmatpush2.bf16.msra.mxu0 0
        %2278 = vmatprep.subr.bf16.mxu0 0
        %2279 = vmatpush2.bf16.msra.mxu0 0
        %2280 = vmatprep.subr.bf16.mxu0 0
        %2281 = vmatpush2.bf16.msra.mxu0 0
        %2282 = vmatprep.subr.bf16.mxu0 0
        %2283 = vmatpush2.bf16.msra.mxu0 0
        %2284 = vmatprep.subr.bf16.mxu0 0
        %2285 = vmatpush2.bf16.msra.mxu0 0
        %2286 = vmatprep.subr.bf16.mxu0 0
        %2287 = vmatpush2.bf16.msra.mxu0 0
        %2288 = vmatprep.subr.bf16.mxu0 0
        %2289 = vmatpush2.bf16.msra.mxu0 0
        %2290 = vmatprep.subr.bf16.mxu0 0
        %2291 = vmatpush2.bf16.msra.mxu0 0
        %2292 = vmatprep.mubr.bf16.mxu0 0
        %2293 = vmatmul.mubr.bf16.gmra.mxu0 %v2196
        %v2294 = vpop.f32.mrf.mxu0
        %v2295 = vadd.f32 %v2102, %v2294
        %v2296 = vpop.f32.mrf.mxu0
        %v2297 = vpop.f32.mrf.mxu0
        %v2298 = vadd.f32 %v2105, %v2297
        %v2299 = vpop.f32.mrf.mxu0
        %2300 = vmatprep.mubr.bf16.mxu0 0
        %2301 = vmatmul.mubr.bf16.gmra.mxu0 %v2197
        %v2302 = vpop.f32.mrf.mxu0
        %v2303 = vadd.f32 %v2110, %v2302
        %v2304 = vpop.f32.mrf.mxu0
        %v2305 = vpop.f32.mrf.mxu0
        %v2306 = vadd.f32 %v2113, %v2305
        %v2307 = vpop.f32.mrf.mxu0
        %2308 = vmatprep.mubr.bf16.mxu0 0
        %2309 = vmatmul.mubr.bf16.gmra.mxu0 %v2198
        %v2310 = vpop.f32.mrf.mxu0
        %v2311 = vadd.f32 %v2118, %v2310
        %v2312 = vpop.f32.mrf.mxu0
        %v2313 = vpop.f32.mrf.mxu0
        %v2314 = vadd.f32 %v2121, %v2313
        %v2315 = vpop.f32.mrf.mxu0
        %2316 = vmatprep.mubr.bf16.mxu0 0
        %2317 = vmatmul.mubr.bf16.gmra.mxu0 %v2199
        %v2318 = vpop.f32.mrf.mxu0
        %v2319 = vadd.f32 %v2126, %v2318
        %v2320 = vpop.f32.mrf.mxu0
        %v2321 = vpop.f32.mrf.mxu0
        %v2322 = vadd.f32 %v2129, %v2321
        %v2323 = vpop.f32.mrf.mxu0
        %2324 = vmatprep.mubr.bf16.mxu0 0
        %2325 = vmatmul.mubr.bf16.gmra.mxu0 %v2200
        %v2326 = vpop.f32.mrf.mxu0
        %v2327 = vadd.f32 %v2134, %v2326
        %v2328 = vpop.f32.mrf.mxu0
        %v2329 = vpop.f32.mrf.mxu0
        %v2330 = vadd.f32 %v2137, %v2329
        %v2331 = vpop.f32.mrf.mxu0
        %2332 = vmatprep.mubr.bf16.mxu0 0
        %2333 = vmatmul.mubr.bf16.gmra.mxu0 %v2201
        %v2334 = vpop.f32.mrf.mxu0
        %v2335 = vadd.f32 %v2142, %v2334
        %v2336 = vpop.f32.mrf.mxu0
        %v2337 = vpop.f32.mrf.mxu0
        %v2338 = vadd.f32 %v2145, %v2337
        %v2339 = vpop.f32.mrf.mxu0
        %2340 = vmatprep.mubr.bf16.mxu0 0
        %2341 = vmatmul.mubr.bf16.gmra.mxu0 %v2202
        %v2342 = vpop.f32.mrf.mxu0
        %v2343 = vadd.f32 %v2150, %v2342
        %v2344 = vpop.f32.mrf.mxu0
        %v2345 = vpop.f32.mrf.mxu0
        %v2346 = vadd.f32 %v2153, %v2345
        %v2347 = vpop.f32.mrf.mxu0
        %2348 = vmatprep.mubr.bf16.mxu0 0
        %2349 = vmatmul.mubr.bf16.gmra.mxu0 %v2203
        %v2350 = vpop.f32.mrf.mxu0
        %v2351 = vadd.f32 %v2158, %v2350
        %v2352 = vpop.f32.mrf.mxu0
        %v2353 = vpop.f32.mrf.mxu0
        %v2354 = vadd.f32 %v2161, %v2353
        %v2355 = vpop.f32.mrf.mxu0
        %2356 = vdwg.mxu0
        %v2357 = vld [vmem:[%s512] sm:$0xf]
        %v2358 = vld [vmem:[%s512 + $0x4] sm:$0xf]
        %v2359 = vld [vmem:[%s512 + $0x8] sm:$0xf]
        %v2360 = vld [vmem:[%s512 + $0xc] sm:$0xf]
        %v2361 = vld [vmem:[%s512 + $0x10] sm:$0xf]
        %v2362 = vld [vmem:[%s512 + $0x14] sm:$0xf]
        %v2363 = vld [vmem:[%s512 + $0x18] sm:$0xf]
        %v2364 = vld [vmem:[%s512 + $0x1c] sm:$0xf]
        %v2365 = vld [vmem:[%s512 + $0x20] sm:$0xf]
        %v2366 = vld [vmem:[%s512 + $0x24] sm:$0xf]
        %v2367 = vld [vmem:[%s512 + $0x28] sm:$0xf]
        %v2368 = vld [vmem:[%s512 + $0x2c] sm:$0xf]
        %v2369 = vld [vmem:[%s512 + $0x30] sm:$0xf]
        %v2370 = vld [vmem:[%s512 + $0x34] sm:$0xf]
        %v2371 = vld [vmem:[%s512 + $0x38] sm:$0xf]
        %v2372 = vld [vmem:[%s512 + $0x3c] sm:$0xf]
        %v2373 = vld [vmem:[#allocation14] sm:$0xf]
        %v2374 = vld [vmem:[#allocation14 + $0x4] sm:$0xf]
        %v2375 = vld [vmem:[#allocation14 + $0x8] sm:$0xf]
        %v2376 = vld [vmem:[#allocation14 + $0xc] sm:$0xf]
        %v2377 = vld [vmem:[#allocation14 + $0x10] sm:$0xf]
        %v2378 = vld [vmem:[#allocation14 + $0x14] sm:$0xf]
        %v2379 = vld [vmem:[#allocation14 + $0x18] sm:$0xf]
        %v2380 = vld [vmem:[#allocation14 + $0x1c] sm:$0xf]
        %v2381 = vld [vmem:[#allocation14 + $0x20] sm:$0xf]
        %v2382 = vld [vmem:[#allocation14 + $0x24] sm:$0xf]
        %v2383 = vld [vmem:[#allocation14 + $0x28] sm:$0xf]
        %v2384 = vld [vmem:[#allocation14 + $0x2c] sm:$0xf]
        %v2385 = vld [vmem:[#allocation14 + $0x30] sm:$0xf]
        %v2386 = vld [vmem:[#allocation14 + $0x34] sm:$0xf]
        %v2387 = vld [vmem:[#allocation14 + $0x38] sm:$0xf]
        %v2388 = vld [vmem:[#allocation14 + $0x3c] sm:$0xf]
        %v2405 = vunpack.c.l.b16 %v2357
        %v2406 = vunpack.c.l.b16 %v2358
        %v2407 = vunpack.c.l.b16 %v2359
        %v2408 = vunpack.c.l.b16 %v2360
        %v2409 = vunpack.c.l.b16 %v2361
        %v2410 = vunpack.c.l.b16 %v2362
        %v2411 = vunpack.c.l.b16 %v2363
        %v2412 = vunpack.c.l.b16 %v2364
        %v2413 = vunpack.c.l.b16 %v2365
        %v2414 = vunpack.c.l.b16 %v2366
        %v2415 = vunpack.c.l.b16 %v2367
        %v2416 = vunpack.c.l.b16 %v2368
        %v2417 = vunpack.c.l.b16 %v2369
        %v2418 = vunpack.c.l.b16 %v2370
        %v2419 = vunpack.c.l.b16 %v2371
        %v2420 = vunpack.c.l.b16 %v2372
        %v2421 = vpack.c.b16 %v2406, %v2405
        %v2422 = vpack.c.b16 %v2408, %v2407
        %v2423 = vpack.c.b16 %v2410, %v2409
        %v2424 = vpack.c.b16 %v2412, %v2411
        %v2425 = vpack.c.b16 %v2414, %v2413
        %v2426 = vpack.c.b16 %v2416, %v2415
        %v2427 = vpack.c.b16 %v2418, %v2417
        %v2428 = vpack.c.b16 %v2420, %v2419
        %v2453 = vunpack.c.l.b16 %v2373
        %v2454 = vunpack.c.l.b16 %v2374
        %v2455 = vunpack.c.l.b16 %v2375
        %v2456 = vunpack.c.l.b16 %v2376
        %v2457 = vunpack.c.l.b16 %v2377
        %v2458 = vunpack.c.l.b16 %v2378
        %v2459 = vunpack.c.l.b16 %v2379
        %v2460 = vunpack.c.l.b16 %v2380
        %v2461 = vunpack.c.l.b16 %v2381
        %v2462 = vunpack.c.l.b16 %v2382
        %v2463 = vunpack.c.l.b16 %v2383
        %v2464 = vunpack.c.l.b16 %v2384
        %v2465 = vunpack.c.l.b16 %v2385
        %v2466 = vunpack.c.l.b16 %v2386
        %v2467 = vunpack.c.l.b16 %v2387
        %v2468 = vunpack.c.l.b16 %v2388
        %v2469 = vpack.c.b16 %v2454, %v2453
        %v2470 = vpack.c.b16 %v2456, %v2455
        %v2471 = vpack.c.b16 %v2458, %v2457
        %v2472 = vpack.c.b16 %v2460, %v2459
        %v2473 = vpack.c.b16 %v2462, %v2461
        %v2474 = vpack.c.b16 %v2464, %v2463
        %v2475 = vpack.c.b16 %v2466, %v2465
        %v2476 = vpack.c.b16 %v2468, %v2467
        %2485 = vmatprep.subr.bf16.mxu0 0
        %2486 = vmatpush1.bf16.msra.mxu0 %v2476
        %2487 = vmatprep.subr.bf16.mxu0 0
        %2488 = vmatpush1.bf16.msra.mxu0 %v2475
        %2489 = vmatprep.subr.bf16.mxu0 0
        %2490 = vmatpush1.bf16.msra.mxu0 %v2474
        %2491 = vmatprep.subr.bf16.mxu0 0
        %2492 = vmatpush1.bf16.msra.mxu0 %v2473
        %2493 = vmatprep.subr.bf16.mxu0 0
        %2494 = vmatpush1.bf16.msra.mxu0 %v2472
        %2495 = vmatprep.subr.bf16.mxu0 0
        %2496 = vmatpush1.bf16.msra.mxu0 %v2471
        %2497 = vmatprep.subr.bf16.mxu0 0
        %2498 = vmatpush1.bf16.msra.mxu0 %v2470
        %2499 = vmatprep.subr.bf16.mxu0 0
        %2500 = vmatpush1.bf16.msra.mxu0 %v2469
        %2501 = vmatprep.subr.bf16.mxu0 0
        %2502 = vmatpush2.bf16.msra.mxu0 0
        %2503 = vmatprep.subr.bf16.mxu0 0
        %2504 = vmatpush2.bf16.msra.mxu0 0
        %2505 = vmatprep.subr.bf16.mxu0 0
        %2506 = vmatpush2.bf16.msra.mxu0 0
        %2507 = vmatprep.subr.bf16.mxu0 0
        %2508 = vmatpush2.bf16.msra.mxu0 0
        %2509 = vmatprep.subr.bf16.mxu0 0
        %2510 = vmatpush2.bf16.msra.mxu0 0
        %2511 = vmatprep.subr.bf16.mxu0 0
        %2512 = vmatpush2.bf16.msra.mxu0 0
        %2513 = vmatprep.subr.bf16.mxu0 0
        %2514 = vmatpush2.bf16.msra.mxu0 0
        %2515 = vmatprep.subr.bf16.mxu0 0
        %2516 = vmatpush2.bf16.msra.mxu0 0
        %2517 = vmatprep.mubr.bf16.mxu0 0
        %2518 = vmatmul.mubr.bf16.gmra.mxu0 %v2421
        %v2519 = vpop.f32.mrf.mxu0
        %v2520 = vadd.f32 0.0, %v2519
        %v2521 = vpop.f32.mrf.mxu0
        %v2522 = vpop.f32.mrf.mxu0
        %v2523 = vadd.f32 0.0, %v2522
        %v2524 = vpop.f32.mrf.mxu0
        %2525 = vmatprep.mubr.bf16.mxu0 0
        %2526 = vmatmul.mubr.bf16.gmra.mxu0 %v2422
        %v2527 = vpop.f32.mrf.mxu0
        %v2528 = vadd.f32 0.0, %v2527
        %v2529 = vpop.f32.mrf.mxu0
        %v2530 = vpop.f32.mrf.mxu0
        %v2531 = vadd.f32 0.0, %v2530
        %v2532 = vpop.f32.mrf.mxu0
        %2533 = vmatprep.mubr.bf16.mxu0 0
        %2534 = vmatmul.mubr.bf16.gmra.mxu0 %v2423
        %v2535 = vpop.f32.mrf.mxu0
        %v2536 = vadd.f32 0.0, %v2535
        %v2537 = vpop.f32.mrf.mxu0
        %v2538 = vpop.f32.mrf.mxu0
        %v2539 = vadd.f32 0.0, %v2538
        %v2540 = vpop.f32.mrf.mxu0
        %2541 = vmatprep.mubr.bf16.mxu0 0
        %2542 = vmatmul.mubr.bf16.gmra.mxu0 %v2424
        %v2543 = vpop.f32.mrf.mxu0
        %v2544 = vadd.f32 0.0, %v2543
        %v2545 = vpop.f32.mrf.mxu0
        %v2546 = vpop.f32.mrf.mxu0
        %v2547 = vadd.f32 0.0, %v2546
        %v2548 = vpop.f32.mrf.mxu0
        %2549 = vmatprep.mubr.bf16.mxu0 0
        %2550 = vmatmul.mubr.bf16.gmra.mxu0 %v2425
        %v2551 = vpop.f32.mrf.mxu0
        %v2552 = vadd.f32 0.0, %v2551
        %v2553 = vpop.f32.mrf.mxu0
        %v2554 = vpop.f32.mrf.mxu0
        %v2555 = vadd.f32 0.0, %v2554
        %v2556 = vpop.f32.mrf.mxu0
        %2557 = vmatprep.mubr.bf16.mxu0 0
        %2558 = vmatmul.mubr.bf16.gmra.mxu0 %v2426
        %v2559 = vpop.f32.mrf.mxu0
        %v2560 = vadd.f32 0.0, %v2559
        %v2561 = vpop.f32.mrf.mxu0
        %v2562 = vpop.f32.mrf.mxu0
        %v2563 = vadd.f32 0.0, %v2562
        %v2564 = vpop.f32.mrf.mxu0
        %2565 = vmatprep.mubr.bf16.mxu0 0
        %2566 = vmatmul.mubr.bf16.gmra.mxu0 %v2427
        %v2567 = vpop.f32.mrf.mxu0
        %v2568 = vadd.f32 0.0, %v2567
        %v2569 = vpop.f32.mrf.mxu0
        %v2570 = vpop.f32.mrf.mxu0
        %v2571 = vadd.f32 0.0, %v2570
        %v2572 = vpop.f32.mrf.mxu0
        %2573 = vmatprep.mubr.bf16.mxu0 0
        %2574 = vmatmul.mubr.bf16.gmra.mxu0 %v2428
        %v2575 = vpop.f32.mrf.mxu0
        %v2576 = vadd.f32 0.0, %v2575
        %v2577 = vpop.f32.mrf.mxu0
        %v2578 = vpop.f32.mrf.mxu0
        %v2579 = vadd.f32 0.0, %v2578
        %v2580 = vpop.f32.mrf.mxu0
        %2581 = vdwg.mxu0
        %v2582 = vadd.f32 %v2295, %v2520
        %v2583 = vadd.f32 %v2298, %v2523
        %v2584 = vadd.f32 %v2303, %v2528
        %v2585 = vadd.f32 %v2306, %v2531
        %v2586 = vadd.f32 %v2311, %v2536
        %v2587 = vadd.f32 %v2314, %v2539
        %v2588 = vadd.f32 %v2319, %v2544
        %v2589 = vadd.f32 %v2322, %v2547
        %v2590 = vadd.f32 %v2327, %v2552
        %v2591 = vadd.f32 %v2330, %v2555
        %v2592 = vadd.f32 %v2335, %v2560
        %v2593 = vadd.f32 %v2338, %v2563
        %v2594 = vadd.f32 %v2343, %v2568
        %v2595 = vadd.f32 %v2346, %v2571
        %v2596 = vadd.f32 %v2351, %v2576
        %v2597 = vadd.f32 %v2354, %v2579
        %v2598 = vld [vmem:[%s8] sm:$0x1]
        %v2600 = vlaneseq
        %v2601 = vshrl.u32 %v2600, 7
        %v2602 = vsub.s32 0, %v2601
        %v2603 = vrot.slane %v2598, %v2602
        %v2605 = vadd.f32 %v2582, %v2603
        %v2606 = vadd.f32 %v2583, %v2603
        %v2607 = vadd.f32 %v2584, %v2603
        %v2608 = vadd.f32 %v2585, %v2603
        %v2609 = vadd.f32 %v2586, %v2603
        %v2610 = vadd.f32 %v2587, %v2603
        %v2611 = vadd.f32 %v2588, %v2603
        %v2612 = vadd.f32 %v2589, %v2603
        %v2613 = vadd.f32 %v2590, %v2603
        %v2614 = vadd.f32 %v2591, %v2603
        %v2615 = vadd.f32 %v2592, %v2603
        %v2616 = vadd.f32 %v2593, %v2603
        %v2617 = vadd.f32 %v2594, %v2603
        %v2618 = vadd.f32 %v2595, %v2603
        %v2619 = vadd.f32 %v2596, %v2603
        %v2620 = vadd.f32 %v2597, %v2603
        %v2621 = vld [vmem:[#allocation8] sm:$0xf]
        %v2622 = vld [vmem:[#allocation8 + $0x4] sm:$0xf]
        %v2623 = vld [vmem:[#allocation8 + $0x8] sm:$0xf]
        %v2624 = vld [vmem:[#allocation8 + $0xc] sm:$0xf]
        %v2625 = vld [vmem:[#allocation8 + $0x10] sm:$0xf]
        %v2626 = vld [vmem:[#allocation8 + $0x14] sm:$0xf]
        %v2627 = vld [vmem:[#allocation8 + $0x18] sm:$0xf]
        %v2628 = vld [vmem:[#allocation8 + $0x1c] sm:$0xf]
        %v2629 = vld [vmem:[#allocation8 + $0x20] sm:$0xf]
        %v2630 = vld [vmem:[#allocation8 + $0x24] sm:$0xf]
        %v2631 = vld [vmem:[#allocation8 + $0x28] sm:$0xf]
        %v2632 = vld [vmem:[#allocation8 + $0x2c] sm:$0xf]
        %v2633 = vld [vmem:[#allocation8 + $0x30] sm:$0xf]
        %v2634 = vld [vmem:[#allocation8 + $0x34] sm:$0xf]
        %v2635 = vld [vmem:[#allocation8 + $0x38] sm:$0xf]
        %v2636 = vld [vmem:[#allocation8 + $0x3c] sm:$0xf]
        %v2637 = vunpack.c.l.bf16 %v2621
        %v2638 = vunpack.c.l.bf16 %v2622
        %v2639 = vunpack.c.l.bf16 %v2623
        %v2640 = vunpack.c.l.bf16 %v2624
        %v2641 = vunpack.c.l.bf16 %v2625
        %v2642 = vunpack.c.l.bf16 %v2626
        %v2643 = vunpack.c.l.bf16 %v2627
        %v2644 = vunpack.c.l.bf16 %v2628
        %v2645 = vunpack.c.l.bf16 %v2629
        %v2646 = vunpack.c.l.bf16 %v2630
        %v2647 = vunpack.c.l.bf16 %v2631
        %v2648 = vunpack.c.l.bf16 %v2632
        %v2649 = vunpack.c.l.bf16 %v2633
        %v2650 = vunpack.c.l.bf16 %v2634
        %v2651 = vunpack.c.l.bf16 %v2635
        %v2652 = vunpack.c.l.bf16 %v2636
        %v2653 = vadd.f32 %v2605, %v2637
        %v2654 = vadd.f32 %v2606, %v2638
        %v2655 = vadd.f32 %v2607, %v2639
        %v2656 = vadd.f32 %v2608, %v2640
        %v2657 = vadd.f32 %v2609, %v2641
        %v2658 = vadd.f32 %v2610, %v2642
        %v2659 = vadd.f32 %v2611, %v2643
        %v2660 = vadd.f32 %v2612, %v2644
        %v2661 = vadd.f32 %v2613, %v2645
        %v2662 = vadd.f32 %v2614, %v2646
        %v2663 = vadd.f32 %v2615, %v2647
        %v2664 = vadd.f32 %v2616, %v2648
        %v2665 = vadd.f32 %v2617, %v2649
        %v2666 = vadd.f32 %v2618, %v2650
        %v2667 = vadd.f32 %v2619, %v2651
        %v2668 = vadd.f32 %v2620, %v2652
        %2669 = vadd.xlane.f32.xlu0 %v2653
        %v2670 = vpop.xlane.xlu0 %2669
        %2671 = vadd.xlane.f32.xlu0 %v2654
        %v2672 = vpop.xlane.xlu0 %2671
        %2673 = vadd.xlane.f32.xlu0 %v2655
        %v2674 = vpop.xlane.xlu0 %2673
        %2675 = vadd.xlane.f32.xlu0 %v2656
        %v2676 = vpop.xlane.xlu0 %2675
        %2677 = vadd.xlane.f32.xlu0 %v2657
        %v2678 = vpop.xlane.xlu0 %2677
        %2679 = vadd.xlane.f32.xlu0 %v2658
        %v2680 = vpop.xlane.xlu0 %2679
        %2681 = vadd.xlane.f32.xlu0 %v2659
        %v2682 = vpop.xlane.xlu0 %2681
        %2683 = vadd.xlane.f32.xlu0 %v2660
        %v2684 = vpop.xlane.xlu0 %2683
        %2685 = vadd.xlane.f32.xlu0 %v2661
        %v2686 = vpop.xlane.xlu0 %2685
        %2687 = vadd.xlane.f32.xlu0 %v2662
        %v2688 = vpop.xlane.xlu0 %2687
        %2689 = vadd.xlane.f32.xlu0 %v2663
        %v2690 = vpop.xlane.xlu0 %2689
        %2691 = vadd.xlane.f32.xlu0 %v2664
        %v2692 = vpop.xlane.xlu0 %2691
        %2693 = vadd.xlane.f32.xlu0 %v2665
        %v2694 = vpop.xlane.xlu0 %2693
        %2695 = vadd.xlane.f32.xlu0 %v2666
        %v2696 = vpop.xlane.xlu0 %2695
        %2697 = vadd.xlane.f32.xlu0 %v2667
        %v2698 = vpop.xlane.xlu0 %2697
        %2699 = vadd.xlane.f32.xlu0 %v2668
        %v2700 = vpop.xlane.xlu0 %2699
        %v2701 = vrcp.pop 128.0
        %v2702 = vmul.f32 %v2670, %v2701
        %v2703 = vmul.f32 %v2672, %v2701
        %v2704 = vmul.f32 %v2674, %v2701
        %v2705 = vmul.f32 %v2676, %v2701
        %v2706 = vmul.f32 %v2678, %v2701
        %v2707 = vmul.f32 %v2680, %v2701
        %v2708 = vmul.f32 %v2682, %v2701
        %v2709 = vmul.f32 %v2684, %v2701
        %v2710 = vmul.f32 %v2686, %v2701
        %v2711 = vmul.f32 %v2688, %v2701
        %v2712 = vmul.f32 %v2690, %v2701
        %v2713 = vmul.f32 %v2692, %v2701
        %v2714 = vmul.f32 %v2694, %v2701
        %v2715 = vmul.f32 %v2696, %v2701
        %v2716 = vmul.f32 %v2698, %v2701
        %v2717 = vmul.f32 %v2700, %v2701
        %v2718 = vmul.f32 %v2653, %v2653
        %v2719 = vmul.f32 %v2654, %v2654
        %v2720 = vmul.f32 %v2655, %v2655
        %v2721 = vmul.f32 %v2656, %v2656
        %v2722 = vmul.f32 %v2657, %v2657
        %v2723 = vmul.f32 %v2658, %v2658
        %v2724 = vmul.f32 %v2659, %v2659
        %v2725 = vmul.f32 %v2660, %v2660
        %v2726 = vmul.f32 %v2661, %v2661
        %v2727 = vmul.f32 %v2662, %v2662
        %v2728 = vmul.f32 %v2663, %v2663
        %v2729 = vmul.f32 %v2664, %v2664
        %v2730 = vmul.f32 %v2665, %v2665
        %v2731 = vmul.f32 %v2666, %v2666
        %v2732 = vmul.f32 %v2667, %v2667
        %v2733 = vmul.f32 %v2668, %v2668
        %2734 = vadd.xlane.f32.xlu0 %v2718
        %v2735 = vpop.xlane.xlu0 %2734
        %2736 = vadd.xlane.f32.xlu0 %v2719
        %v2737 = vpop.xlane.xlu0 %2736
        %2738 = vadd.xlane.f32.xlu0 %v2720
        %v2739 = vpop.xlane.xlu0 %2738
        %2740 = vadd.xlane.f32.xlu0 %v2721
        %v2741 = vpop.xlane.xlu0 %2740
        %2742 = vadd.xlane.f32.xlu0 %v2722
        %v2743 = vpop.xlane.xlu0 %2742
        %2744 = vadd.xlane.f32.xlu0 %v2723
        %v2745 = vpop.xlane.xlu0 %2744
        %2746 = vadd.xlane.f32.xlu0 %v2724
        %v2747 = vpop.xlane.xlu0 %2746
        %2748 = vadd.xlane.f32.xlu0 %v2725
        %v2749 = vpop.xlane.xlu0 %2748
        %2750 = vadd.xlane.f32.xlu0 %v2726
        %v2751 = vpop.xlane.xlu0 %2750
        %2752 = vadd.xlane.f32.xlu0 %v2727
        %v2753 = vpop.xlane.xlu0 %2752
        %2754 = vadd.xlane.f32.xlu0 %v2728
        %v2755 = vpop.xlane.xlu0 %2754
        %2756 = vadd.xlane.f32.xlu0 %v2729
        %v2757 = vpop.xlane.xlu0 %2756
        %2758 = vadd.xlane.f32.xlu0 %v2730
        %v2759 = vpop.xlane.xlu0 %2758
        %2760 = vadd.xlane.f32.xlu0 %v2731
        %v2761 = vpop.xlane.xlu0 %2760
        %2762 = vadd.xlane.f32.xlu0 %v2732
        %v2763 = vpop.xlane.xlu0 %2762
        %2764 = vadd.xlane.f32.xlu0 %v2733
        %v2765 = vpop.xlane.xlu0 %2764
        %v2766 = vmul.f32 %v2735, %v2701
        %v2767 = vmul.f32 %v2737, %v2701
        %v2768 = vmul.f32 %v2739, %v2701
        %v2769 = vmul.f32 %v2741, %v2701
        %v2770 = vmul.f32 %v2743, %v2701
        %v2771 = vmul.f32 %v2745, %v2701
        %v2772 = vmul.f32 %v2747, %v2701
        %v2773 = vmul.f32 %v2749, %v2701
        %v2774 = vmul.f32 %v2751, %v2701
        %v2775 = vmul.f32 %v2753, %v2701
        %v2776 = vmul.f32 %v2755, %v2701
        %v2777 = vmul.f32 %v2757, %v2701
        %v2778 = vmul.f32 %v2759, %v2701
        %v2779 = vmul.f32 %v2761, %v2701
        %v2780 = vmul.f32 %v2763, %v2701
        %v2781 = vmul.f32 %v2765, %v2701
        %v2782 = vmul.f32 %v2702, %v2702
        %v2783 = vmul.f32 %v2703, %v2703
        %v2784 = vmul.f32 %v2704, %v2704
        %v2785 = vmul.f32 %v2705, %v2705
        %v2786 = vmul.f32 %v2706, %v2706
        %v2787 = vmul.f32 %v2707, %v2707
        %v2788 = vmul.f32 %v2708, %v2708
        %v2789 = vmul.f32 %v2709, %v2709
        %v2790 = vmul.f32 %v2710, %v2710
        %v2791 = vmul.f32 %v2711, %v2711
        %v2792 = vmul.f32 %v2712, %v2712
        %v2793 = vmul.f32 %v2713, %v2713
        %v2794 = vmul.f32 %v2714, %v2714
        %v2795 = vmul.f32 %v2715, %v2715
        %v2796 = vmul.f32 %v2716, %v2716
        %v2797 = vmul.f32 %v2717, %v2717
        %v2798 = vsub.f32 %v2766, %v2782
        %v2799 = vsub.f32 %v2767, %v2783
        %v2800 = vsub.f32 %v2768, %v2784
        %v2801 = vsub.f32 %v2769, %v2785
        %v2802 = vsub.f32 %v2770, %v2786
        %v2803 = vsub.f32 %v2771, %v2787
        %v2804 = vsub.f32 %v2772, %v2788
        %v2805 = vsub.f32 %v2773, %v2789
        %v2806 = vsub.f32 %v2774, %v2790
        %v2807 = vsub.f32 %v2775, %v2791
        %v2808 = vsub.f32 %v2776, %v2792
        %v2809 = vsub.f32 %v2777, %v2793
        %v2810 = vsub.f32 %v2778, %v2794
        %v2811 = vsub.f32 %v2779, %v2795
        %v2812 = vsub.f32 %v2780, %v2796
        %v2813 = vsub.f32 %v2781, %v2797
        %v2814 = vsub.f32 %v2653, %v2702
        %v2815 = vsub.f32 %v2654, %v2703
        %v2816 = vsub.f32 %v2655, %v2704
        %v2817 = vsub.f32 %v2656, %v2705
        %v2818 = vsub.f32 %v2657, %v2706
        %v2819 = vsub.f32 %v2658, %v2707
        %v2820 = vsub.f32 %v2659, %v2708
        %v2821 = vsub.f32 %v2660, %v2709
        %v2822 = vsub.f32 %v2661, %v2710
        %v2823 = vsub.f32 %v2662, %v2711
        %v2824 = vsub.f32 %v2663, %v2712
        %v2825 = vsub.f32 %v2664, %v2713
        %v2826 = vsub.f32 %v2665, %v2714
        %v2827 = vsub.f32 %v2666, %v2715
        %v2828 = vsub.f32 %v2667, %v2716
        %v2829 = vsub.f32 %v2668, %v2717
        %v2830 = vadd.f32 %v2798, 1e-12
        %v2831 = vadd.f32 %v2799, 1e-12
        %v2832 = vadd.f32 %v2800, 1e-12
        %v2833 = vadd.f32 %v2801, 1e-12
        %v2834 = vadd.f32 %v2802, 1e-12
        %v2835 = vadd.f32 %v2803, 1e-12
        %v2836 = vadd.f32 %v2804, 1e-12
        %v2837 = vadd.f32 %v2805, 1e-12
        %v2838 = vadd.f32 %v2806, 1e-12
        %v2839 = vadd.f32 %v2807, 1e-12
        %v2840 = vadd.f32 %v2808, 1e-12
        %v2841 = vadd.f32 %v2809, 1e-12
        %v2842 = vadd.f32 %v2810, 1e-12
        %v2843 = vadd.f32 %v2811, 1e-12
        %v2844 = vadd.f32 %v2812, 1e-12
        %v2845 = vadd.f32 %v2813, 1e-12
        %v2846 = vrsqrt.pop %v2830
        %v2847 = vrsqrt.pop %v2831
        %v2848 = vrsqrt.pop %v2832
        %v2849 = vrsqrt.pop %v2833
        %v2850 = vrsqrt.pop %v2834
        %v2851 = vrsqrt.pop %v2835
        %v2852 = vrsqrt.pop %v2836
        %v2853 = vrsqrt.pop %v2837
        %v2854 = vrsqrt.pop %v2838
        %v2855 = vrsqrt.pop %v2839
        %v2856 = vrsqrt.pop %v2840
        %v2857 = vrsqrt.pop %v2841
        %v2858 = vrsqrt.pop %v2842
        %v2859 = vrsqrt.pop %v2843
        %v2860 = vrsqrt.pop %v2844
        %v2861 = vrsqrt.pop %v2845
        %v2862 = vmul.f32 %v2814, %v2846
        %v2863 = vmul.f32 %v2815, %v2847
        %v2864 = vmul.f32 %v2816, %v2848
        %v2865 = vmul.f32 %v2817, %v2849
        %v2866 = vmul.f32 %v2818, %v2850
        %v2867 = vmul.f32 %v2819, %v2851
        %v2868 = vmul.f32 %v2820, %v2852
        %v2869 = vmul.f32 %v2821, %v2853
        %v2870 = vmul.f32 %v2822, %v2854
        %v2871 = vmul.f32 %v2823, %v2855
        %v2872 = vmul.f32 %v2824, %v2856
        %v2873 = vmul.f32 %v2825, %v2857
        %v2874 = vmul.f32 %v2826, %v2858
        %v2875 = vmul.f32 %v2827, %v2859
        %v2876 = vmul.f32 %v2828, %v2860
        %v2877 = vmul.f32 %v2829, %v2861
        %v2878 = vld [vmem:[%s9] sm:$0x1]
        %v2880 = vlaneseq
        %v2881 = vshrl.u32 %v2880, 7
        %v2882 = vsub.s32 0, %v2881
        %v2883 = vrot.slane %v2878, %v2882
        %v2885 = vmul.f32 %v2862, %v2883
        %v2886 = vmul.f32 %v2863, %v2883
        %v2887 = vmul.f32 %v2864, %v2883
        %v2888 = vmul.f32 %v2865, %v2883
        %v2889 = vmul.f32 %v2866, %v2883
        %v2890 = vmul.f32 %v2867, %v2883
        %v2891 = vmul.f32 %v2868, %v2883
        %v2892 = vmul.f32 %v2869, %v2883
        %v2893 = vmul.f32 %v2870, %v2883
        %v2894 = vmul.f32 %v2871, %v2883
        %v2895 = vmul.f32 %v2872, %v2883
        %v2896 = vmul.f32 %v2873, %v2883
        %v2897 = vmul.f32 %v2874, %v2883
        %v2898 = vmul.f32 %v2875, %v2883
        %v2899 = vmul.f32 %v2876, %v2883
        %v2900 = vmul.f32 %v2877, %v2883
        %v2901 = vld [vmem:[%s10] sm:$0x1]
        %v2903 = vlaneseq
        %v2904 = vshrl.u32 %v2903, 7
        %v2905 = vsub.s32 0, %v2904
        %v2906 = vrot.slane %v2901, %v2905
        %v2908 = vadd.f32 %v2885, %v2906
        %v2909 = vadd.f32 %v2886, %v2906
        %v2910 = vadd.f32 %v2887, %v2906
        %v2911 = vadd.f32 %v2888, %v2906
        %v2912 = vadd.f32 %v2889, %v2906
        %v2913 = vadd.f32 %v2890, %v2906
        %v2914 = vadd.f32 %v2891, %v2906
        %v2915 = vadd.f32 %v2892, %v2906
        %v2916 = vadd.f32 %v2893, %v2906
        %v2917 = vadd.f32 %v2894, %v2906
        %v2918 = vadd.f32 %v2895, %v2906
        %v2919 = vadd.f32 %v2896, %v2906
        %v2920 = vadd.f32 %v2897, %v2906
        %v2921 = vadd.f32 %v2898, %v2906
        %v2922 = vadd.f32 %v2899, %v2906
        %v2923 = vadd.f32 %v2900, %v2906
        %v2924 = vpack.c.bf16 %v2909, %v2908
        %v2925 = vpack.c.bf16 %v2911, %v2910
        %v2926 = vpack.c.bf16 %v2913, %v2912
        %v2927 = vpack.c.bf16 %v2915, %v2914
        %v2928 = vpack.c.bf16 %v2917, %v2916
        %v2929 = vpack.c.bf16 %v2919, %v2918
        %v2930 = vpack.c.bf16 %v2921, %v2920
        %v2931 = vpack.c.bf16 %v2923, %v2922
        %v2940 = vunpack.c.l.b16 %v2924
        %v2941 = vunpack.c.h.b16 %v2924
        %v2942 = vunpack.c.l.b16 %v2925
        %v2943 = vunpack.c.h.b16 %v2925
        %v2944 = vunpack.c.l.b16 %v2926
        %v2945 = vunpack.c.h.b16 %v2926
        %v2946 = vunpack.c.l.b16 %v2927
        %v2947 = vunpack.c.h.b16 %v2927
        %v2948 = vunpack.c.l.b16 %v2928
        %v2949 = vunpack.c.h.b16 %v2928
        %v2950 = vunpack.c.l.b16 %v2929
        %v2951 = vunpack.c.h.b16 %v2929
        %v2952 = vunpack.c.l.b16 %v2930
        %v2953 = vunpack.c.h.b16 %v2930
        %v2954 = vunpack.c.l.b16 %v2931
        %v2955 = vunpack.c.h.b16 %v2931
        %v2956 = vpack.c.b16 %v2940, %v2940
        %v2957 = vpack.c.b16 %v2941, %v2941
        %v2958 = vpack.c.b16 %v2942, %v2942
        %v2959 = vpack.c.b16 %v2943, %v2943
        %v2960 = vpack.c.b16 %v2944, %v2944
        %v2961 = vpack.c.b16 %v2945, %v2945
        %v2962 = vpack.c.b16 %v2946, %v2946
        %v2963 = vpack.c.b16 %v2947, %v2947
        %v2964 = vpack.c.b16 %v2948, %v2948
        %v2965 = vpack.c.b16 %v2949, %v2949
        %v2966 = vpack.c.b16 %v2950, %v2950
        %v2967 = vpack.c.b16 %v2951, %v2951
        %v2968 = vpack.c.b16 %v2952, %v2952
        %v2969 = vpack.c.b16 %v2953, %v2953
        %v2970 = vpack.c.b16 %v2954, %v2954
        %v2971 = vpack.c.b16 %v2955, %v2955
        %2988 = vst [vmem:[%s580] sm:$0xf] %v2956
        %2989 = vst [vmem:[%s580 + $0x4] sm:$0xf] %v2957
        %2990 = vst [vmem:[%s580 + $0x8] sm:$0xf] %v2958
        %2991 = vst [vmem:[%s580 + $0xc] sm:$0xf] %v2959
        %2992 = vst [vmem:[%s580 + $0x10] sm:$0xf] %v2960
        %2993 = vst [vmem:[%s580 + $0x14] sm:$0xf] %v2961
        %2994 = vst [vmem:[%s580 + $0x18] sm:$0xf] %v2962
        %2995 = vst [vmem:[%s580 + $0x1c] sm:$0xf] %v2963
        %2996 = vst [vmem:[%s580 + $0x20] sm:$0xf] %v2964
        %2997 = vst [vmem:[%s580 + $0x24] sm:$0xf] %v2965
        %2998 = vst [vmem:[%s580 + $0x28] sm:$0xf] %v2966
        %2999 = vst [vmem:[%s580 + $0x2c] sm:$0xf] %v2967
        %3000 = vst [vmem:[%s580 + $0x30] sm:$0xf] %v2968
        %3001 = vst [vmem:[%s580 + $0x34] sm:$0xf] %v2969
        %3002 = vst [vmem:[%s580 + $0x38] sm:$0xf] %v2970
        %3003 = vst [vmem:[%s580 + $0x3c] sm:$0xf] %v2971
        %s3004 = sand.u32 %s288, 1
        %s3005 = scalar_lea.sflag [#allocation4], %s3004
        %s3006 = sand.u32 %s288, 1
        %s3007 = smul.addr %s3006, 64
        %s3008 = scalar_lea.vmem [#allocation16], %s3007
        // Predicated region
        $region97: #{tpu_custom_call.1} parent=63 // pred_check
          %p3009 = pneg %p298
        $region98: #{tpu_custom_call.1} parent=63 // pred_check_branch
          %3011 = sbr.rel (%p3009) target = $region100
        $region99: #{tpu_custom_call.1} parent=63 // pred_region
          %s3012 = smul.u32 16, %s34
          %s3014 = ssub.s32 1024, 1024
          %3015 = vsyncadd %s3005, %s3014
          %s3016 = smul.addr %s3012, 64
          %s3017 = scalar_lea.hbm %s11, %s3016
          %s3018 = sshll.u32 %s3008, 4
          %s3019 = int_to_ptr.vmem [resolvable:$true] %s3018
          %3024 = dma.vmem_to_hbm [thread:$0]  %s3019, 1024, %s3017, %s3005, 64, 64, 4
        $region100: #{tpu_custom_call.1} parent=63 // pred_fallthru
          _
      $region64: #{tpu_custom_call.1} parent=5 // pred_fallthru
        _
      %p3025 = scmp.le.s32.totalorder 2, %s29
      // Predicated region
      $region101: #{tpu_custom_call.1} parent=5 // pred_check
        %p3026 = pneg %p3025
      $region102: #{tpu_custom_call.1} parent=5 // pred_check_branch
        %3028 = sbr.rel (%p3026) target = $region104
      $region103: #{tpu_custom_call.1} parent=5 // pred_region
        %s3029 = ssub.s32 %s29, 2
        // Predicated region
        $region105: #{tpu_custom_call.1} parent=103 // pred_check
          %p3030 = pneg %p304
        $region106: #{tpu_custom_call.1} parent=103 // pred_check_branch
          %3032 = sbr.rel (%p3030) target = $region108
        $region107: #{tpu_custom_call.1} parent=103 // pred_region
          %s3033 = sand.u32 %s289, 1
          %s3034 = scalar_lea.sflag [#allocation4], %s3033
          %s3035 = sand.u32 %s289, 1
          %s3036 = smul.addr %s3035, 64
          %s3037 = scalar_lea.vmem [#allocation16], %s3036
          %3038 = dma.done %s3034, 1024
        $region108: #{tpu_custom_call.1} parent=103 // pred_fallthru
          _
      $region104: #{tpu_custom_call.1} parent=5 // pred_fallthru
        _
    $region6: #{tpu_custom_call.1} parent=1 // loop_footer
      %s33 = sadd.s32 1, %s29
    $region7: #{tpu_custom_call.1} parent=1 // loop_footer_branch
      %28 = sbr.rel target = $region3
    $region8: #{tpu_custom_call.1} parent=1 // loop_exit
      _
    %3039 = vsyncpa [#allocation3], 1
    %s3040 = scalar_lea.sflag [#allocation3], 1
    %3041 = vsyncpa %s3040, 1
    %3042 = vsyncpa [#allocation6], 1
    %s3043 = scalar_lea.sflag [#allocation6], 1
    %3044 = vsyncpa %s3043, 1
    %3045 = vsyncpa [#allocation9], 1
    %3046 = vsyncpa [#allocation12], 1
    %3047 = vsyncpa [#allocation15], 1
    %3048 = vsyncpa [#allocation4], 1
    %s3049 = scalar_lea.sflag [#allocation4], 1
    %3050 = vsyncpa %s3049, 1

</llo_original>
